<compile_context>
chip_gen: v7x
topology: tpu7x:2x2x1
jax: 0.10.0
libtpu: 0.0.40
codegen_flags: <defaults>
</compile_context>

<pallas_src>
import jax
import jax.numpy as jnp
from jax.experimental import pallas as pl
from jax.experimental.pallas import tpu as pltpu

DIR_DIM = 16
POS_DIM = 32
IN_DIM = DIR_DIM + POS_DIM        # 48
HIDDEN = 64
SIGMA_OUT = 16
COLOR_IN = DIR_DIM + SIGMA_OUT    # 32
COLOR_OUT = 3
OUT_DIM = COLOR_OUT + 1           # 4
W2C_COLS = HIDDEN + 1             # 65: [W2 @ C1_out | w2[:, 0]]


def _round_up(n, m):
    return ((n + m - 1) // m) * m


def _mlp_kernel(x_ref, w1c1_ref, w2c_ref, c2_ref, c3_ref, o_ref):
    """Whole forward pass for one row-tile of the batch, fused in VMEM.

    The dir/pos split, the [dir, out] concat, and the `out @ C1_out` matmul are all
    folded into the pre-fused weight matrices built in the wrapper, so the kernel runs
    exactly 4 MXU passes and never slices/concatenates its *inputs* along lanes.
    Rows of a ragged last block are undefined on input and masked on the output store.
    """
    x = x_ref[...].astype(jnp.bfloat16)                              # (TN, 48) bf16

    # pass 1: [h_pre | c_dir] = x @ [W1p | C1d]   (48 -> 128, one MXU pass)
    hc = jnp.dot(x, w1c1_ref[...], preferred_element_type=jnp.float32)   # (TN, 128) f32
    h = jnp.maximum(hc[:, :HIDDEN], 0.0).astype(jnp.bfloat16)            # (TN, 64)
    c_dir = hc[:, HIDDEN:]                                               # (TN, 64) f32

    # pass 2: [out @ C1o | sigma_logit] = h @ [W2@C1o | w2[:,0]]   (64 -> 65, one pass)
    z = jnp.dot(h, w2c_ref[...], preferred_element_type=jnp.float32)     # (TN, 65) f32
    sigma = jnp.exp(z[:, HIDDEN:W2C_COLS])                               # (TN, 1)  f32

    c = jnp.maximum(c_dir + z[:, :HIDDEN], 0.0).astype(jnp.bfloat16)     # (TN, 64)

    # pass 3
    c = jnp.dot(c, c2_ref[...], preferred_element_type=jnp.float32)
    c = jnp.maximum(c, 0.0).astype(jnp.bfloat16)
    # pass 4
    logits = jnp.dot(c, c3_ref[...], preferred_element_type=jnp.float32)  # (TN, 3)
    color = jax.nn.sigmoid(logits)

    # Single store of the full (TN, 4) block (one vst stream instead of two masked ones).
    o_ref[...] = jnp.concatenate([color, sigma], axis=-1).astype(o_ref.dtype)


def _prepare_weights(params, dtype=jnp.bfloat16):
    """Fold the dir/pos slice, the [dir, out] concat and the `out @ C1_out` matmul into
    pre-fused weight matrices; cast everything to bf16 once (outside the kernel)."""
    w1, w2 = params["w1"], params["w2"]
    c1, c2, c3 = params["c1"], params["c2"], params["c3"]

    # pass-1 RHS (48, 128): [ W1 with zero rows for dir cols | C1_dir with zero rows for pos cols ]
    w1c1 = jnp.zeros((IN_DIM, 2 * HIDDEN), jnp.float32)
    w1c1 = w1c1.at[DIR_DIM:, :HIDDEN].set(w1)
    w1c1 = w1c1.at[:DIR_DIM, HIDDEN:].set(c1[:DIR_DIM, :])

    # pass-2 RHS (64, 65): [ W2 @ C1_out (computed in f32, cast once) | W2[:, 0] ]
    w2c = jnp.concatenate([w2 @ c1[DIR_DIM:, :], w2[:, 0:1]], axis=1)

    return (w1c1.astype(dtype), w2c.astype(dtype), c2.astype(dtype), c3.astype(dtype))


def mlp_forward(x, params, *, tile_n=2048):
    """x: (N, 48) float32.  params: dict of transposed (in, out) f32 weights.

    tile_n ~ 2048-4096 is the sweet spot: fits v7x's 64 MiB VMEM with room to spare and
    keeps >= 2 grid steps (for 2-TensorCore sharding) whenever N >= 2*tile_n.
    """
    N = x.shape[0]

    # Row tile: multiple of 16 (bf16 sublane packing), clamped for small N.
    tile = _round_up(min(tile_n, _round_up(N, 16)), 16)
    grid = (pl.cdiv(N, tile),)   # ragged last block handled by Pallas read-pad / write-mask

    w1c1, w2c, c2, c3 = _prepare_weights(params)

    full = lambda shape: pl.BlockSpec(shape, lambda i: (0, 0))

    return pl.pallas_call(
        _mlp_kernel,
        out_shape=jax.ShapeDtypeStruct((N, OUT_DIM), jnp.float32),
        grid_spec=pltpu.PrefetchScalarGridSpec(
            num_scalar_prefetch=0,
            grid=grid,
            in_specs=[
                pl.BlockSpec((tile, IN_DIM), lambda i: (i, 0)),   # x rows (f32, cast in-kernel)
                full((IN_DIM, 2 * HIDDEN)),                       # [W1p | C1d]   (48, 128)
                full((HIDDEN, W2C_COLS)),                         # [W2@C1o | w2_col0] (64, 65)
                full((HIDDEN, HIDDEN)),                           # C2 (64, 64)
                full((HIDDEN, COLOR_OUT)),                        # C3 (64, 3)
            ],
            out_specs=pl.BlockSpec((tile, OUT_DIM), lambda i: (i, 0)),
        ),
        compiler_params=pltpu.CompilerParams(
            dimension_semantics=("parallel",),
        ),
    )(x, w1c1, w2c, c2, c3)


def init_params(key):
    """Deterministic init. PyTorch nn.Linear stores W as (out, in) and computes
    y = x @ W.T; we pre-transpose to (in, out) for the kernel."""
    ks = jax.random.split(key, 5)

    def linear_w(k, fan_in, fan_out):
        bound = 1.0 / jnp.sqrt(fan_in)
        w = jax.random.uniform(k, (fan_out, fan_in), jnp.float32, -bound, bound)
        return w.T  # (in, out)

    return {
        "w1": linear_w(ks[0], POS_DIM, HIDDEN),     # sigma Linear(32, 64)
        "w2": linear_w(ks[1], HIDDEN, SIGMA_OUT),   # sigma Linear(64, 16)
        "c1": linear_w(ks[2], COLOR_IN, HIDDEN),    # color Linear(32, 64)
        "c2": linear_w(ks[3], HIDDEN, HIDDEN),      # color Linear(64, 64)
        "c3": linear_w(ks[4], HIDDEN, COLOR_OUT),   # color Linear(64, 3)
    }


def mlp_reference(x, params):
    """Plain-JAX f32 reference implementing the original PyTorch forward semantics."""
    input_dir, input_pos = x[:, :DIR_DIM], x[:, DIR_DIM:]
    h = jnp.maximum(input_pos @ params["w1"], 0.0)
    out = h @ params["w2"]
    sigma = jnp.exp(out[:, 0:1])
    color_in = jnp.concatenate([input_dir, out], axis=-1)
    c = jnp.maximum(color_in @ params["c1"], 0.0)
    c = jnp.maximum(c @ params["c2"], 0.0)
    color = jax.nn.sigmoid(c @ params["c3"])
    return jnp.concatenate([color, sigma], axis=-1)


if __name__ == "__main__":
    key = jax.random.PRNGKey(0)
    k_x, k_p = jax.random.split(key)

    N = 300  # deliberately not a multiple of the tile: exercises the ragged-block path
    x = jax.random.normal(k_x, (N, IN_DIM), dtype=jnp.float32)
    params = init_params(k_p)

    out = mlp_forward(x, params, tile_n=256)   # small tile for the tiny test; 2048 default
    out = jax.block_until_ready(out)

    ref = mlp_reference(x, params)
    assert out.shape == (N, OUT_DIM)
    assert bool(jnp.allclose(out, ref, atol=5e-2, rtol=5e-2)), "mismatch vs reference"

    print("KERNEL_OK")
</pallas_src>

<mosaic_0001>
module attributes {stable_mosaic.version = 11 : i64} {
  func.func @_mlp_kernel(%arg0: i32, %arg1: memref<256x48xf32, #tpu.memory_space<vmem>>, %arg2: memref<48x128xbf16, #tpu.memory_space<vmem>>, %arg3: memref<64x65xbf16, #tpu.memory_space<vmem>>, %arg4: memref<64x64xbf16, #tpu.memory_space<vmem>>, %arg5: memref<64x3xbf16, #tpu.memory_space<vmem>>, %arg6: memref<256x4xf32, #tpu.memory_space<vmem>>) attributes {dimension_semantics = [#tpu.dimension_semantics<parallel>], iteration_bounds = array<i64: 2>, scalar_prefetch = 0 : i64, scratch_operands = 0 : i64, tpu.core_type = #tpu.core_type<tc>, window_params = [{transform_indices = @transform_0, window_bounds = array<i64: 256, 48>}, {pipeline_mode = #tpu.pipeline_mode<synchronous>, transform_indices = @transform_1, window_bounds = array<i64: 48, 128>}, {pipeline_mode = #tpu.pipeline_mode<synchronous>, transform_indices = @transform_2, window_bounds = array<i64: 64, 65>}, {pipeline_mode = #tpu.pipeline_mode<synchronous>, transform_indices = @transform_3, window_bounds = array<i64: 64, 64>}, {pipeline_mode = #tpu.pipeline_mode<synchronous>, transform_indices = @transform_4, window_bounds = array<i64: 64, 3>}, {transform_indices = @transform_5, window_bounds = array<i64: 256, 4>}]} {
    %c0 = arith.constant 0 : index
    %c0_0 = arith.constant 0 : index
    %0 = vector.load %arg1[%c0, %c0_0] : memref<256x48xf32, #tpu.memory_space<vmem>>, vector<256x48xf32>
    %1 = arith.truncf %0 : vector<256x48xf32> to vector<256x48xbf16>
    %c0_1 = arith.constant 0 : index
    %c0_2 = arith.constant 0 : index
    %2 = vector.load %arg2[%c0_1, %c0_2] : memref<48x128xbf16, #tpu.memory_space<vmem>>, vector<48x128xbf16>
    %cst = arith.constant dense<0.000000e+00> : vector<256x128xf32>
    %3 = tpu.matmul %1, %2, %cst {dimension_numbers = #tpu.dot_dimension_numbers<[1], [0], [0], [1], [0, 0, 1, 1], [], []>} : vector<256x48xbf16>, vector<48x128xbf16>, vector<256x128xf32> -> vector<256x128xf32>
    %4 = vector.extract_strided_slice %3 {offsets = [0, 0], sizes = [256, 64], strides = [1, 1]} : vector<256x128xf32> to vector<256x64xf32>
    %cst_3 = arith.constant 0.000000e+00 : f32
    %5 = vector.broadcast %cst_3 : f32 to vector<256x64xf32>
    %6 = arith.maximumf %4, %5 : vector<256x64xf32>
    %7 = arith.truncf %6 : vector<256x64xf32> to vector<256x64xbf16>
    %8 = vector.extract_strided_slice %3 {offsets = [0, 64], sizes = [256, 64], strides = [1, 1]} : vector<256x128xf32> to vector<256x64xf32>
    %c0_4 = arith.constant 0 : index
    %c0_5 = arith.constant 0 : index
    %9 = vector.load %arg3[%c0_4, %c0_5] : memref<64x65xbf16, #tpu.memory_space<vmem>>, vector<64x65xbf16>
    %cst_6 = arith.constant dense<0.000000e+00> : vector<256x65xf32>
    %10 = tpu.matmul %7, %9, %cst_6 {dimension_numbers = #tpu.dot_dimension_numbers<[1], [0], [0], [1], [0, 0, 1, 1], [], []>} : vector<256x64xbf16>, vector<64x65xbf16>, vector<256x65xf32> -> vector<256x65xf32>
    %11 = vector.extract_strided_slice %10 {offsets = [0, 64], sizes = [256, 1], strides = [1, 1]} : vector<256x65xf32> to vector<256x1xf32>
    %12 = math.exp %11 : vector<256x1xf32>
    %13 = vector.extract_strided_slice %10 {offsets = [0, 0], sizes = [256, 64], strides = [1, 1]} : vector<256x65xf32> to vector<256x64xf32>
    %14 = arith.addf %8, %13 : vector<256x64xf32>
    %cst_7 = arith.constant 0.000000e+00 : f32
    %15 = vector.broadcast %cst_7 : f32 to vector<256x64xf32>
    %16 = arith.maximumf %14, %15 : vector<256x64xf32>
    %17 = arith.truncf %16 : vector<256x64xf32> to vector<256x64xbf16>
    %c0_8 = arith.constant 0 : index
    %c0_9 = arith.constant 0 : index
    %18 = vector.load %arg4[%c0_8, %c0_9] : memref<64x64xbf16, #tpu.memory_space<vmem>>, vector<64x64xbf16>
    %cst_10 = arith.constant dense<0.000000e+00> : vector<256x64xf32>
    %19 = tpu.matmul %17, %18, %cst_10 {dimension_numbers = #tpu.dot_dimension_numbers<[1], [0], [0], [1], [0, 0, 1, 1], [], []>} : vector<256x64xbf16>, vector<64x64xbf16>, vector<256x64xf32> -> vector<256x64xf32>
    %cst_11 = arith.constant 0.000000e+00 : f32
    %20 = vector.broadcast %cst_11 : f32 to vector<256x64xf32>
    %21 = arith.maximumf %19, %20 : vector<256x64xf32>
    %22 = arith.truncf %21 : vector<256x64xf32> to vector<256x64xbf16>
    %c0_12 = arith.constant 0 : index
    %c0_13 = arith.constant 0 : index
    %23 = vector.load %arg5[%c0_12, %c0_13] : memref<64x3xbf16, #tpu.memory_space<vmem>>, vector<64x3xbf16>
    %cst_14 = arith.constant dense<0.000000e+00> : vector<256x3xf32>
    %24 = tpu.matmul %22, %23, %cst_14 {dimension_numbers = #tpu.dot_dimension_numbers<[1], [0], [0], [1], [0, 0, 1, 1], [], []>} : vector<256x64xbf16>, vector<64x3xbf16>, vector<256x3xf32> -> vector<256x3xf32>
    %25 = arith.negf %24 : vector<256x3xf32>
    %26 = math.exp %25 : vector<256x3xf32>
    %cst_15 = arith.constant 1.000000e+00 : f32
    %27 = vector.broadcast %cst_15 : f32 to vector<256x3xf32>
    %28 = arith.addf %27, %26 : vector<256x3xf32>
    %29 = arith.divf %27, %28 : vector<256x3xf32>
    %30 = tpu.concatenate %29, %12 in 1 : vector<256x3xf32>, vector<256x1xf32> -> vector<256x4xf32>
    %c0_16 = arith.constant 0 : index
    %c0_17 = arith.constant 0 : index
    %31 = vector.load %arg6[%c0_16, %c0_17] : memref<256x4xf32, #tpu.memory_space<vmem>>, vector<256x4xf32>
    tpu.vector_store %arg6[%c0_16, %c0_17], %30 {strides = array<i32>} : memref<256x4xf32, #tpu.memory_space<vmem>>, vector<256x4xf32>,
    return
  }
  func.func @transform_0(%arg0: i32) -> (i32, i32) {
    %c0_i32 = arith.constant 0 : i32
    %c0_i32_0 = arith.constant 0 : i32
    return %arg0, %c0_i32 : i32, i32
  }
  func.func @transform_1(%arg0: i32) -> (i32, i32) {
    %c0_i32 = arith.constant 0 : i32
    %c0_i32_0 = arith.constant 0 : i32
    %c0_i32_1 = arith.constant 0 : i32
    return %c0_i32, %c0_i32_0 : i32, i32
  }
  func.func @transform_2(%arg0: i32) -> (i32, i32) {
    %c0_i32 = arith.constant 0 : i32
    %c0_i32_0 = arith.constant 0 : i32
    %c0_i32_1 = arith.constant 0 : i32
    return %c0_i32, %c0_i32_0 : i32, i32
  }
  func.func @transform_3(%arg0: i32) -> (i32, i32) {
    %c0_i32 = arith.constant 0 : i32
    %c0_i32_0 = arith.constant 0 : i32
    %c0_i32_1 = arith.constant 0 : i32
    return %c0_i32, %c0_i32_0 : i32, i32
  }
  func.func @transform_4(%arg0: i32) -> (i32, i32) {
    %c0_i32 = arith.constant 0 : i32
    %c0_i32_0 = arith.constant 0 : i32
    %c0_i32_1 = arith.constant 0 : i32
    return %c0_i32, %c0_i32_0 : i32, i32
  }
  func.func @transform_5(%arg0: i32) -> (i32, i32) {
    %c0_i32 = arith.constant 0 : i32
    %c0_i32_0 = arith.constant 0 : i32
    return %arg0, %c0_i32 : i32, i32
  }
}

</mosaic_0001>

<llo_original>
// kernel: tpu_custom_call.1
$region0: #{tpu_custom_call.1}
  #allocation0 [shape = 'u32[]', space=smem, size = 0x4, offset = 0x4, fixed_abs, tag = 'smem constant byte address 0x4 - core index']
  #allocation1 [shape = 'u32[144,128]{1,0:T(1,128)}', space=vmem, size = 0x12000, scoped, tag = 'internal scratch']
  %s0 = inlined_call_operand.vmem [shape: f32[300,48], index: 0, kind: input, shape index: {}]
  %s1 = inlined_call_operand.vmem [shape: bf16[48,128], index: 1, kind: input, shape index: {}]
  %s2 = inlined_call_operand.vmem [shape: bf16[64,65], index: 2, kind: input, shape index: {}]
  %s3 = inlined_call_operand.vmem [shape: bf16[64,64], index: 3, kind: input, shape index: {}]
  %s4 = inlined_call_operand.vmem [shape: bf16[64,3], index: 4, kind: input, shape index: {}]
  %s5 = inlined_call_operand.vmem [shape: f32[300,4], index: 5, kind: output, shape index: {}]
  %s6 = sld [smem:[#allocation0]]
  $region101: #{tpu_custom_call.1} parent=0
    _
  %s8 = ssub.s32 1, %s6
  %s9 = scalar_select 0, %s8, %s6
  $region1: #{tpu_custom_call.1} parent=0
    #allocation2 [shape = 'u8[262144]{0}', space=vmem, size = 0x40000, scoped, tag = 'output window, operand 0']
    loop: start=0, step=1, limit=4
    $region2: #{tpu_custom_call.1} parent=1 // loop_pre_header
      _
    $region3: #{tpu_custom_call.1} parent=1 // loop_header
      %s11 = sphi 0, %s15
      %p12 = scmp.ge.s32.totalorder %s11, 4
      %s21 = sphi 0, %s23
      %s24 = sphi 0, %s21
      %s25 = sphi 0, %s24
      %s41 = sphi 0, %s25
      %s45 = sphi 0, %s45
      %s47 = sphi 0, %s45
      %s48 = sphi 0, %s47
      %s62 = sphi 0, %s48
      %s66 = sphi 0, %s66
      %s68 = sphi 0, %s66
      %s69 = sphi 0, %s68
      %s83 = sphi 0, %s69
      %s87 = sphi 0, %s87
      %s89 = sphi 0, %s87
      %s90 = sphi 0, %s89
      %s104 = sphi 0, %s90
      %s108 = sphi 0, %s108
      %s110 = sphi 0, %s108
      %s111 = sphi 0, %s110
      %s125 = sphi 0, %s111
      %s131 = sphi 0, %s133
      %s134 = sphi 0, %s131
      %s135 = sphi 0, %s134
      %s151 = sphi 0, %s135
    $region4: #{tpu_custom_call.1} parent=1 // loop_header_branch
      %14 = sbr.rel (%p12) target = $region8
    $region5: #{tpu_custom_call.1} parent=1 // loop_body
      %s16 = ssub.s32 %s11, 1
      %s17 = ssub.s32 %s11, 2
      %s18 = sadd.s32 %s11, 1
      %s19 = ssub.s32 %s11, %s18
      %p20 = scmp.eq.s32.totalorder %s19, 0
      %s22 = sadd.s32 %s21, 1
      %s23 = scalar_select %p20, %s21, %s22
      %p26 = pneg %p20
      %p27 = scmp.eq.s32.totalorder %s11, 1
      %p28 = por %p26, %p27
      %p29 = scmp.ne.s32.totalorder %s21, %s24
      %p30 = scmp.eq.s32.totalorder %s11, 0
      %p31 = por %p29, %p30
      %p32 = scmp.ne.s32.totalorder %s21, %s24
      %p33 = scmp.eq.s32.totalorder %s16, 1
      %p34 = por %p32, %p33
      %p35 = scmp.ne.s32.totalorder %s24, %s25
      %p36 = scmp.eq.s32.totalorder %s16, 0
      %p37 = por %p35, %p36
      %p38 = scmp.ne.s32.totalorder %s24, %s25
      %p39 = scmp.eq.s32.totalorder %s17, 1
      %p40 = por %p38, %p39
      %p42 = scmp.ne.s32.totalorder %s25, %s41
      %p43 = scmp.eq.s32.totalorder %s17, 0
      %p44 = por %p42, %p43
      %s46 = sadd.s32 %s45, 1
      %p49 = scmp.eq.s32.totalorder %s11, 1
      %p50 = scmp.ne.s32.totalorder %s45, %s47
      %p51 = scmp.eq.s32.totalorder %s11, 0
      %p52 = por %p50, %p51
      %p53 = scmp.ne.s32.totalorder %s45, %s47
      %p54 = scmp.eq.s32.totalorder %s16, 1
      %p55 = por %p53, %p54
      %p56 = scmp.ne.s32.totalorder %s47, %s48
      %p57 = scmp.eq.s32.totalorder %s16, 0
      %p58 = por %p56, %p57
      %p59 = scmp.ne.s32.totalorder %s47, %s48
      %p60 = scmp.eq.s32.totalorder %s17, 1
      %p61 = por %p59, %p60
      %p63 = scmp.ne.s32.totalorder %s48, %s62
      %p64 = scmp.eq.s32.totalorder %s17, 0
      %p65 = por %p63, %p64
      %s67 = sadd.s32 %s66, 1
      %p70 = scmp.eq.s32.totalorder %s11, 1
      %p71 = scmp.ne.s32.totalorder %s66, %s68
      %p72 = scmp.eq.s32.totalorder %s11, 0
      %p73 = por %p71, %p72
      %p74 = scmp.ne.s32.totalorder %s66, %s68
      %p75 = scmp.eq.s32.totalorder %s16, 1
      %p76 = por %p74, %p75
      %p77 = scmp.ne.s32.totalorder %s68, %s69
      %p78 = scmp.eq.s32.totalorder %s16, 0
      %p79 = por %p77, %p78
      %p80 = scmp.ne.s32.totalorder %s68, %s69
      %p81 = scmp.eq.s32.totalorder %s17, 1
      %p82 = por %p80, %p81
      %p84 = scmp.ne.s32.totalorder %s69, %s83
      %p85 = scmp.eq.s32.totalorder %s17, 0
      %p86 = por %p84, %p85
      %s88 = sadd.s32 %s87, 1
      %p91 = scmp.eq.s32.totalorder %s11, 1
      %p92 = scmp.ne.s32.totalorder %s87, %s89
      %p93 = scmp.eq.s32.totalorder %s11, 0
      %p94 = por %p92, %p93
      %p95 = scmp.ne.s32.totalorder %s87, %s89
      %p96 = scmp.eq.s32.totalorder %s16, 1
      %p97 = por %p95, %p96
      %p98 = scmp.ne.s32.totalorder %s89, %s90
      %p99 = scmp.eq.s32.totalorder %s16, 0
      %p100 = por %p98, %p99
      %p101 = scmp.ne.s32.totalorder %s89, %s90
      %p102 = scmp.eq.s32.totalorder %s17, 1
      %p103 = por %p101, %p102
      %p105 = scmp.ne.s32.totalorder %s90, %s104
      %p106 = scmp.eq.s32.totalorder %s17, 0
      %p107 = por %p105, %p106
      %s109 = sadd.s32 %s108, 1
      %p112 = scmp.eq.s32.totalorder %s11, 1
      %p113 = scmp.ne.s32.totalorder %s108, %s110
      %p114 = scmp.eq.s32.totalorder %s11, 0
      %p115 = por %p113, %p114
      %p116 = scmp.ne.s32.totalorder %s108, %s110
      %p117 = scmp.eq.s32.totalorder %s16, 1
      %p118 = por %p116, %p117
      %p119 = scmp.ne.s32.totalorder %s110, %s111
      %p120 = scmp.eq.s32.totalorder %s16, 0
      %p121 = por %p119, %p120
      %p122 = scmp.ne.s32.totalorder %s110, %s111
      %p123 = scmp.eq.s32.totalorder %s17, 1
      %p124 = por %p122, %p123
      %p126 = scmp.ne.s32.totalorder %s111, %s125
      %p127 = scmp.eq.s32.totalorder %s17, 0
      %p128 = por %p126, %p127
      %s129 = ssub.s32 %s11, %s18
      %p130 = scmp.eq.s32.totalorder %s129, 0
      %s132 = sadd.s32 %s131, 1
      %s133 = scalar_select %p130, %s131, %s132
      %p136 = pneg %p130
      %p137 = scmp.eq.s32.totalorder %s11, 1
      %p138 = por %p136, %p137
      %p139 = scmp.ne.s32.totalorder %s131, %s134
      %p140 = scmp.eq.s32.totalorder %s11, 0
      %p141 = por %p139, %p140
      %p142 = scmp.ne.s32.totalorder %s131, %s134
      %p143 = scmp.eq.s32.totalorder %s16, 1
      %p144 = por %p142, %p143
      %p145 = scmp.ne.s32.totalorder %s134, %s135
      %p146 = scmp.eq.s32.totalorder %s16, 0
      %p147 = por %p145, %p146
      %p148 = scmp.ne.s32.totalorder %s134, %s135
      %p149 = scmp.eq.s32.totalorder %s17, 1
      %p150 = por %p148, %p149
      %p152 = scmp.ne.s32.totalorder %s135, %s151
      %p153 = scmp.eq.s32.totalorder %s17, 0
      %p154 = por %p152, %p153
      %p155 = scmp.le.s32.totalorder 1, %s11
      %p156 = scmp.lt.s32.totalorder %s11, 3
      %p157 = pnand %p155, %p156
      %p158 = pneg %p157
      // Predicated region
      $region9: #{tpu_custom_call.1} parent=5 // pred_check
        _
      $region10: #{tpu_custom_call.1} parent=5 // pred_check_branch
        %160 = sbr.rel (%p157) target = $region12
      $region11: #{tpu_custom_call.1} parent=5 // pred_region
        %s161 = ssub.s32 %s11, 1
        // Predicated region
        $region13: #{tpu_custom_call.1} parent=11 // pred_check
          %p162 = pneg %p58
        $region14: #{tpu_custom_call.1} parent=11 // pred_check_branch
          %164 = sbr.rel (%p162) target = $region16
        $region15: #{tpu_custom_call.1} parent=11 // pred_region
          _
        $region16: #{tpu_custom_call.1} parent=11 // pred_fallthru
          _
        // Predicated region
        $region17: #{tpu_custom_call.1} parent=11 // pred_check
          %p165 = pneg %p79
        $region18: #{tpu_custom_call.1} parent=11 // pred_check_branch
          %167 = sbr.rel (%p165) target = $region20
        $region19: #{tpu_custom_call.1} parent=11 // pred_region
          _
        $region20: #{tpu_custom_call.1} parent=11 // pred_fallthru
          _
        // Predicated region
        $region21: #{tpu_custom_call.1} parent=11 // pred_check
          %p168 = pneg %p100
        $region22: #{tpu_custom_call.1} parent=11 // pred_check_branch
          %170 = sbr.rel (%p168) target = $region24
        $region23: #{tpu_custom_call.1} parent=11 // pred_region
          _
        $region24: #{tpu_custom_call.1} parent=11 // pred_fallthru
          _
        // Predicated region
        $region25: #{tpu_custom_call.1} parent=11 // pred_check
          %p171 = pneg %p121
        $region26: #{tpu_custom_call.1} parent=11 // pred_check_branch
          %173 = sbr.rel (%p171) target = $region28
        $region27: #{tpu_custom_call.1} parent=11 // pred_region
          _
        $region28: #{tpu_custom_call.1} parent=11 // pred_fallthru
          _
      $region12: #{tpu_custom_call.1} parent=5 // pred_fallthru
        _
      %p174 = scmp.lt.s32.totalorder %s11, 2
      // Predicated region
      $region29: #{tpu_custom_call.1} parent=5 // pred_check
        %p175 = pneg %p174
      $region30: #{tpu_custom_call.1} parent=5 // pred_check_branch
        %177 = sbr.rel (%p175) target = $region32
      $region31: #{tpu_custom_call.1} parent=5 // pred_region
        // Predicated region
        $region33: #{tpu_custom_call.1} parent=31 // pred_check
          %p178 = pneg %p31
        $region34: #{tpu_custom_call.1} parent=31 // pred_check_branch
          %180 = sbr.rel (%p178) target = $region36
        $region35: #{tpu_custom_call.1} parent=31 // pred_region
          %s181 = smul.u32 32, %s11
          %s182 = ssub.s32 38, %s181
          %p183 = scmp.lt.s32.totalorder %s182, 32
          %s184 = scalar_select %p183, %s182, 32
          %s185 = smul.u32 128, %s184
          %p186 = scmp.lt.s32.totalorder %s181, 37
          %s187 = scalar_select %p186, %s181, 37
          %s188 = smul.addr %s187, 8
          %s189 = scalar_lea.vmem %s0, %s188
          %s190 = smul.u32 32, %s11
          %s191 = ssub.s32 38, %s190
          %p192 = scmp.lt.s32.totalorder %s191, 32
          %s193 = scalar_select %p192, %s191, 32
          %s194 = smul.u32 128, %s193
        $region36: #{tpu_custom_call.1} parent=31 // pred_fallthru
          _
      $region32: #{tpu_custom_call.1} parent=5 // pred_fallthru
        _
      %p195 = scmp.le.s32.totalorder 1, %s11
      %p196 = scmp.lt.s32.totalorder %s11, 3
      %p197 = pnand %p195, %p196
      %p198 = pneg %p197
      // Predicated region
      $region37: #{tpu_custom_call.1} parent=5 // pred_check
        _
      $region38: #{tpu_custom_call.1} parent=5 // pred_check_branch
        %200 = sbr.rel (%p197) target = $region40
      $region39: #{tpu_custom_call.1} parent=5 // pred_region
        %s201 = ssub.s32 %s11, 1
        %s202 = smul.u32 32, %s16
        %s203 = ssub.s32 38, %s202
        %p204 = scmp.lt.s32.totalorder %s203, 32
        %s205 = scalar_select %p204, %s203, 32
        %s206 = smul.u32 128, %s205
        %p207 = scmp.lt.s32.totalorder %s202, 37
        %s208 = scalar_select %p207, %s202, 37
        %s209 = smul.addr %s208, 8
        %s210 = scalar_lea.vmem %s0, %s209
        %p211 = pneg %p37
        %p212 = pneg %p34
        %p213 = pneg %p58
        %p214 = pneg %p55
        %p215 = pneg %p79
        %p216 = pneg %p76
        %p217 = pneg %p100
        %p218 = pneg %p97
        %p219 = pneg %p121
        %p220 = pneg %p118
        %p221 = pneg %p147
        %p222 = pneg %p144
        %s223 = sand.u32 %s134, 1
        %s224 = sand.u32 %s134, 1
        %s225 = smul.addr %s224, 256
        %s226 = scalar_lea.vmem [#allocation2], %s225
        %s227 = smul.u32 32, %s16
        %s228 = ssub.s32 38, %s227
        %p229 = scmp.lt.s32.totalorder %s228, 32
        %s230 = scalar_select %p229, %s228, 32
        %s231 = smul.u32 128, %s230
        %p232 = scmp.lt.s32.totalorder %s227, 37
        %s233 = scalar_select %p232, %s227, 37
        %s234 = smul.addr %s233, 8
        %s235 = scalar_lea.vmem %s0, %s234
        %s236 = smul.u32 32, %s16
        %s237 = ssub.s32 38, %s236
        %p238 = scmp.lt.s32.totalorder %s237, 32
        %s239 = scalar_select %p238, %s237, 32
        %s240 = smul.u32 128, %s239
        %s241 = smul.u32 32, %s16
        %s242 = ssub.s32 38, %s241
        %p243 = scmp.lt.s32.totalorder %s242, 32
        %s244 = scalar_select %p243, %s242, 32
        %s245 = smul.u32 128, %s244
        %v247 = vld [vmem:[%s235] sm:$0xff]
        %v248 = vld [vmem:[%s235 + $0x8] sm:$0xff]
        %v249 = vld [vmem:[%s235 + $0x10] sm:$0xff]
        %v250 = vld [vmem:[%s235 + $0x18] sm:$0xff]
        %v251 = vld [vmem:[%s235 + $0x20] sm:$0xff]
        %v252 = vld [vmem:[%s235 + $0x28] sm:$0xff]
        %v253 = vld [vmem:[%s235 + $0x30] sm:$0xff]
        %v254 = vld [vmem:[%s235 + $0x38] sm:$0xff]
        %v255 = vld [vmem:[%s235 + $0x40] sm:$0xff]
        %v256 = vld [vmem:[%s235 + $0x48] sm:$0xff]
        %v257 = vld [vmem:[%s235 + $0x50] sm:$0xff]
        %v258 = vld [vmem:[%s235 + $0x58] sm:$0xff]
        %v259 = vld [vmem:[%s235 + $0x60] sm:$0xff]
        %v260 = vld [vmem:[%s235 + $0x68] sm:$0xff]
        %v261 = vld [vmem:[%s235 + $0x70] sm:$0xff]
        %v262 = vld [vmem:[%s235 + $0x78] sm:$0xff]
        %v263 = vld [vmem:[%s235 + $0x80] sm:$0xff]
        %v264 = vld [vmem:[%s235 + $0x88] sm:$0xff]
        %v265 = vld [vmem:[%s235 + $0x90] sm:$0xff]
        %v266 = vld [vmem:[%s235 + $0x98] sm:$0xff]
        %v267 = vld [vmem:[%s235 + $0xa0] sm:$0xff]
        %v268 = vld [vmem:[%s235 + $0xa8] sm:$0xff]
        %v269 = vld [vmem:[%s235 + $0xb0] sm:$0xff]
        %v270 = vld [vmem:[%s235 + $0xb8] sm:$0xff]
        %v271 = vld [vmem:[%s235 + $0xc0] sm:$0xff]
        %v272 = vld [vmem:[%s235 + $0xc8] sm:$0xff]
        %v273 = vld [vmem:[%s235 + $0xd0] sm:$0xff]
        %v274 = vld [vmem:[%s235 + $0xd8] sm:$0xff]
        %v275 = vld [vmem:[%s235 + $0xe0] sm:$0xff]
        %v276 = vld [vmem:[%s235 + $0xe8] sm:$0xff]
        %v277 = vld [vmem:[%s235 + $0xf0] sm:$0xff]
        %v278 = vld [vmem:[%s235 + $0xf8] sm:$0xff]
        %v279 = vpack.c.bf16 %v248, %v247
        %v280 = vpack.c.bf16 %v250, %v249
        %v281 = vpack.c.bf16 %v252, %v251
        %v282 = vpack.c.bf16 %v254, %v253
        %v283 = vpack.c.bf16 %v256, %v255
        %v284 = vpack.c.bf16 %v258, %v257
        %v285 = vpack.c.bf16 %v260, %v259
        %v286 = vpack.c.bf16 %v262, %v261
        %v287 = vpack.c.bf16 %v264, %v263
        %v288 = vpack.c.bf16 %v266, %v265
        %v289 = vpack.c.bf16 %v268, %v267
        %v290 = vpack.c.bf16 %v270, %v269
        %v291 = vpack.c.bf16 %v272, %v271
        %v292 = vpack.c.bf16 %v274, %v273
        %v293 = vpack.c.bf16 %v276, %v275
        %v294 = vpack.c.bf16 %v278, %v277
        %v295 = vld [vmem:[%s1] sm:$0xf]
        %v296 = vld [vmem:[%s1 + $0x4] sm:$0xf]
        %v297 = vld [vmem:[%s1 + $0x8] sm:$0xf]
        %v298 = vld [vmem:[%s1 + $0xc] sm:$0xf]
        %v299 = vld [vmem:[%s1 + $0x10] sm:$0xf]
        %v300 = vld [vmem:[%s1 + $0x14] sm:$0xf]
        %v307 = vunpack.c.l.b16 %v295
        %v308 = vunpack.c.l.b16 %v296
        %v309 = vunpack.c.l.b16 %v297
        %v310 = vunpack.c.l.b16 %v298
        %v311 = vunpack.c.l.b16 %v299
        %v312 = vunpack.c.l.b16 %v300
        %v313 = vpack.c.b16 %v308, %v307
        %v314 = vpack.c.b16 %v310, %v309
        %v315 = vpack.c.b16 %v312, %v311
        %vm319 = vcmask 392192
        %v321 = vsel %vm319, %v279, 0
        %v324 = vsel %vm319, %v280, 0
        %v327 = vsel %vm319, %v281, 0
        %v330 = vsel %vm319, %v282, 0
        %v333 = vsel %vm319, %v283, 0
        %v336 = vsel %vm319, %v284, 0
        %v339 = vsel %vm319, %v285, 0
        %v342 = vsel %vm319, %v286, 0
        %v345 = vsel %vm319, %v287, 0
        %v348 = vsel %vm319, %v288, 0
        %v351 = vsel %vm319, %v289, 0
        %v354 = vsel %vm319, %v290, 0
        %v357 = vsel %vm319, %v291, 0
        %v360 = vsel %vm319, %v292, 0
        %v363 = vsel %vm319, %v293, 0
        %v366 = vsel %vm319, %v294, 0
        %368 = vmatprep.subr.bf16.mxu0 0
        %369 = vmatpush1.bf16.msra.mxu0 %v313
        %370 = vmatprep.subr.bf16.mxu0 0
        %371 = vmatpush1.bf16.msra.mxu0 %v314
        %372 = vmatprep.subr.bf16.mxu0 0
        %373 = vmatpush1.bf16.msra.mxu0 %v315
        %374 = vmatprep.subr.bf16.mxu0 0
        %375 = vmatpush1.bf16.msra.mxu0 0
        %376 = vmatprep.subr.bf16.mxu0 0
        %377 = vmatpush1.bf16.msra.mxu0 0
        %378 = vmatprep.subr.bf16.mxu0 0
        %379 = vmatpush1.bf16.msra.mxu0 0
        %380 = vmatprep.subr.bf16.mxu0 0
        %381 = vmatpush1.bf16.msra.mxu0 0
        %382 = vmatprep.subr.bf16.mxu0 0
        %383 = vmatpush1.bf16.msra.mxu0 0
        %384 = vmatprep.subr.bf16.mxu0 0
        %385 = vmatpush1.bf16.msra.mxu0 0
        %386 = vmatprep.subr.bf16.mxu0 0
        %387 = vmatpush1.bf16.msra.mxu0 0
        %388 = vmatprep.subr.bf16.mxu0 0
        %389 = vmatpush1.bf16.msra.mxu0 0
        %390 = vmatprep.subr.bf16.mxu0 0
        %391 = vmatpush1.bf16.msra.mxu0 0
        %392 = vmatprep.subr.bf16.mxu0 0
        %393 = vmatpush1.bf16.msra.mxu0 0
        %394 = vmatprep.subr.bf16.mxu0 0
        %395 = vmatpush1.bf16.msra.mxu0 0
        %396 = vmatprep.subr.bf16.mxu0 0
        %397 = vmatpush1.bf16.msra.mxu0 0
        %398 = vmatprep.subr.bf16.mxu0 0
        %399 = vmatpush1.bf16.msra.mxu0 0
        %400 = vmatprep.mubr.bf16.mxu0 0
        %401 = vmatmul.mubr.bf16.gmra.mrb[0].mxu0 %v321
        %v402 = vpop.f32.mrb[0].mxu0
        %v403 = vadd.f32 0.0, %v402
        %v404 = vpop.f32.mrb[0].mxu0
        %v405 = vpop.f32.mrb[0].mxu0
        %v406 = vadd.f32 0.0, %v405
        %v407 = vpop.f32.mrb[0].mxu0
        %408 = vmatprep.mubr.bf16.mxu0 0
        %409 = vmatmul.mubr.bf16.gmra.mrb[0].mxu0 %v324
        %v410 = vpop.f32.mrb[0].mxu0
        %v411 = vadd.f32 0.0, %v410
        %v412 = vpop.f32.mrb[0].mxu0
        %v413 = vpop.f32.mrb[0].mxu0
        %v414 = vadd.f32 0.0, %v413
        %v415 = vpop.f32.mrb[0].mxu0
        %416 = vmatprep.mubr.bf16.mxu0 0
        %417 = vmatmul.mubr.bf16.gmra.mrb[0].mxu0 %v327
        %v418 = vpop.f32.mrb[0].mxu0
        %v419 = vadd.f32 0.0, %v418
        %v420 = vpop.f32.mrb[0].mxu0
        %v421 = vpop.f32.mrb[0].mxu0
        %v422 = vadd.f32 0.0, %v421
        %v423 = vpop.f32.mrb[0].mxu0
        %424 = vmatprep.mubr.bf16.mxu0 0
        %425 = vmatmul.mubr.bf16.gmra.mrb[0].mxu0 %v330
        %v426 = vpop.f32.mrb[0].mxu0
        %v427 = vadd.f32 0.0, %v426
        %v428 = vpop.f32.mrb[0].mxu0
        %v429 = vpop.f32.mrb[0].mxu0
        %v430 = vadd.f32 0.0, %v429
        %v431 = vpop.f32.mrb[0].mxu0
        %432 = vmatprep.mubr.bf16.mxu0 0
        %433 = vmatmul.mubr.bf16.gmra.mrb[0].mxu0 %v333
        %v434 = vpop.f32.mrb[0].mxu0
        %v435 = vadd.f32 0.0, %v434
        %v436 = vpop.f32.mrb[0].mxu0
        %v437 = vpop.f32.mrb[0].mxu0
        %v438 = vadd.f32 0.0, %v437
        %v439 = vpop.f32.mrb[0].mxu0
        %440 = vmatprep.mubr.bf16.mxu0 0
        %441 = vmatmul.mubr.bf16.gmra.mrb[0].mxu0 %v336
        %v442 = vpop.f32.mrb[0].mxu0
        %v443 = vadd.f32 0.0, %v442
        %v444 = vpop.f32.mrb[0].mxu0
        %v445 = vpop.f32.mrb[0].mxu0
        %v446 = vadd.f32 0.0, %v445
        %v447 = vpop.f32.mrb[0].mxu0
        %448 = vmatprep.mubr.bf16.mxu0 0
        %449 = vmatmul.mubr.bf16.gmra.mrb[0].mxu0 %v339
        %v450 = vpop.f32.mrb[0].mxu0
        %v451 = vadd.f32 0.0, %v450
        %v452 = vpop.f32.mrb[0].mxu0
        %v453 = vpop.f32.mrb[0].mxu0
        %v454 = vadd.f32 0.0, %v453
        %v455 = vpop.f32.mrb[0].mxu0
        %456 = vmatprep.mubr.bf16.mxu0 0
        %457 = vmatmul.mubr.bf16.gmra.mrb[0].mxu0 %v342
        %v458 = vpop.f32.mrb[0].mxu0
        %v459 = vadd.f32 0.0, %v458
        %v460 = vpop.f32.mrb[0].mxu0
        %v461 = vpop.f32.mrb[0].mxu0
        %v462 = vadd.f32 0.0, %v461
        %v463 = vpop.f32.mrb[0].mxu0
        %464 = vmatprep.mubr.bf16.mxu0 0
        %465 = vmatmul.mubr.bf16.gmra.mrb[0].mxu0 %v345
        %v466 = vpop.f32.mrb[0].mxu0
        %v467 = vadd.f32 0.0, %v466
        %v468 = vpop.f32.mrb[0].mxu0
        %v469 = vpop.f32.mrb[0].mxu0
        %v470 = vadd.f32 0.0, %v469
        %v471 = vpop.f32.mrb[0].mxu0
        %472 = vmatprep.mubr.bf16.mxu0 0
        %473 = vmatmul.mubr.bf16.gmra.mrb[0].mxu0 %v348
        %v474 = vpop.f32.mrb[0].mxu0
        %v475 = vadd.f32 0.0, %v474
        %v476 = vpop.f32.mrb[0].mxu0
        %v477 = vpop.f32.mrb[0].mxu0
        %v478 = vadd.f32 0.0, %v477
        %v479 = vpop.f32.mrb[0].mxu0
        %480 = vmatprep.mubr.bf16.mxu0 0
        %481 = vmatmul.mubr.bf16.gmra.mrb[0].mxu0 %v351
        %v482 = vpop.f32.mrb[0].mxu0
        %v483 = vadd.f32 0.0, %v482
        %v484 = vpop.f32.mrb[0].mxu0
        %v485 = vpop.f32.mrb[0].mxu0
        %v486 = vadd.f32 0.0, %v485
        %v487 = vpop.f32.mrb[0].mxu0
        %488 = vmatprep.mubr.bf16.mxu0 0
        %489 = vmatmul.mubr.bf16.gmra.mrb[0].mxu0 %v354
        %v490 = vpop.f32.mrb[0].mxu0
        %v491 = vadd.f32 0.0, %v490
        %v492 = vpop.f32.mrb[0].mxu0
        %v493 = vpop.f32.mrb[0].mxu0
        %v494 = vadd.f32 0.0, %v493
        %v495 = vpop.f32.mrb[0].mxu0
        %496 = vmatprep.mubr.bf16.mxu0 0
        %497 = vmatmul.mubr.bf16.gmra.mrb[0].mxu0 %v357
        %v498 = vpop.f32.mrb[0].mxu0
        %v499 = vadd.f32 0.0, %v498
        %v500 = vpop.f32.mrb[0].mxu0
        %v501 = vpop.f32.mrb[0].mxu0
        %v502 = vadd.f32 0.0, %v501
        %v503 = vpop.f32.mrb[0].mxu0
        %504 = vmatprep.mubr.bf16.mxu0 0
        %505 = vmatmul.mubr.bf16.gmra.mrb[0].mxu0 %v360
        %v506 = vpop.f32.mrb[0].mxu0
        %v507 = vadd.f32 0.0, %v506
        %v508 = vpop.f32.mrb[0].mxu0
        %v509 = vpop.f32.mrb[0].mxu0
        %v510 = vadd.f32 0.0, %v509
        %v511 = vpop.f32.mrb[0].mxu0
        %512 = vmatprep.mubr.bf16.mxu0 0
        %513 = vmatmul.mubr.bf16.gmra.mrb[0].mxu0 %v363
        %v514 = vpop.f32.mrb[0].mxu0
        %v515 = vadd.f32 0.0, %v514
        %v516 = vpop.f32.mrb[0].mxu0
        %v517 = vpop.f32.mrb[0].mxu0
        %v518 = vadd.f32 0.0, %v517
        %v519 = vpop.f32.mrb[0].mxu0
        %520 = vmatprep.mubr.bf16.mxu0 0
        %521 = vmatmul.mubr.bf16.gmra.mrb[0].mxu0 %v366
        %v522 = vpop.f32.mrb[0].mxu0
        %v523 = vadd.f32 0.0, %v522
        %v524 = vpop.f32.mrb[0].mxu0
        %v525 = vpop.f32.mrb[0].mxu0
        %v526 = vadd.f32 0.0, %v525
        %v527 = vpop.f32.mrb[0].mxu0
        %528 = vdwg.mxu0
        %v529 = vmax.f32 %v403, 0.0
        %v530 = vmax.f32 %v406, 0.0
        %v531 = vmax.f32 %v411, 0.0
        %v532 = vmax.f32 %v414, 0.0
        %v533 = vmax.f32 %v419, 0.0
        %v534 = vmax.f32 %v422, 0.0
        %v535 = vmax.f32 %v427, 0.0
        %v536 = vmax.f32 %v430, 0.0
        %v537 = vmax.f32 %v435, 0.0
        %v538 = vmax.f32 %v438, 0.0
        %v539 = vmax.f32 %v443, 0.0
        %v540 = vmax.f32 %v446, 0.0
        %v541 = vmax.f32 %v451, 0.0
        %v542 = vmax.f32 %v454, 0.0
        %v543 = vmax.f32 %v459, 0.0
        %v544 = vmax.f32 %v462, 0.0
        %v545 = vmax.f32 %v467, 0.0
        %v546 = vmax.f32 %v470, 0.0
        %v547 = vmax.f32 %v475, 0.0
        %v548 = vmax.f32 %v478, 0.0
        %v549 = vmax.f32 %v483, 0.0
        %v550 = vmax.f32 %v486, 0.0
        %v551 = vmax.f32 %v491, 0.0
        %v552 = vmax.f32 %v494, 0.0
        %v553 = vmax.f32 %v499, 0.0
        %v554 = vmax.f32 %v502, 0.0
        %v555 = vmax.f32 %v507, 0.0
        %v556 = vmax.f32 %v510, 0.0
        %v557 = vmax.f32 %v515, 0.0
        %v558 = vmax.f32 %v518, 0.0
        %v559 = vmax.f32 %v523, 0.0
        %v560 = vmax.f32 %v526, 0.0
        %v561 = vpack.c.bf16 %v530, %v529
        %v562 = vpack.c.bf16 %v532, %v531
        %v563 = vpack.c.bf16 %v534, %v533
        %v564 = vpack.c.bf16 %v536, %v535
        %v565 = vpack.c.bf16 %v538, %v537
        %v566 = vpack.c.bf16 %v540, %v539
        %v567 = vpack.c.bf16 %v542, %v541
        %v568 = vpack.c.bf16 %v544, %v543
        %v569 = vpack.c.bf16 %v546, %v545
        %v570 = vpack.c.bf16 %v548, %v547
        %v571 = vpack.c.bf16 %v550, %v549
        %v572 = vpack.c.bf16 %v552, %v551
        %v573 = vpack.c.bf16 %v554, %v553
        %v574 = vpack.c.bf16 %v556, %v555
        %v575 = vpack.c.bf16 %v558, %v557
        %v576 = vpack.c.bf16 %v560, %v559
        %v577 = vld [vmem:[%s2] sm:$0xf]
        %v578 = vld [vmem:[%s2 + $0x4] sm:$0xf]
        %v579 = vld [vmem:[%s2 + $0x8] sm:$0xf]
        %v580 = vld [vmem:[%s2 + $0xc] sm:$0xf]
        %v581 = vld [vmem:[%s2 + $0x10] sm:$0xf]
        %v582 = vld [vmem:[%s2 + $0x14] sm:$0xf]
        %v583 = vld [vmem:[%s2 + $0x18] sm:$0xf]
        %v584 = vld [vmem:[%s2 + $0x1c] sm:$0xf]
        %v593 = vunpack.c.l.b16 %v577
        %v594 = vunpack.c.l.b16 %v578
        %v595 = vunpack.c.l.b16 %v579
        %v596 = vunpack.c.l.b16 %v580
        %v597 = vunpack.c.l.b16 %v581
        %v598 = vunpack.c.l.b16 %v582
        %v599 = vunpack.c.l.b16 %v583
        %v600 = vunpack.c.l.b16 %v584
        %v601 = vpack.c.b16 %v594, %v593
        %v602 = vpack.c.b16 %v596, %v595
        %v603 = vpack.c.b16 %v598, %v597
        %v604 = vpack.c.b16 %v600, %v599
        %vm609 = vcmask 523264
        %v611 = vsel %vm609, %v561, 0
        %v614 = vsel %vm609, %v562, 0
        %v617 = vsel %vm609, %v563, 0
        %v620 = vsel %vm609, %v564, 0
        %v623 = vsel %vm609, %v565, 0
        %v626 = vsel %vm609, %v566, 0
        %v629 = vsel %vm609, %v567, 0
        %v632 = vsel %vm609, %v568, 0
        %v635 = vsel %vm609, %v569, 0
        %v638 = vsel %vm609, %v570, 0
        %v641 = vsel %vm609, %v571, 0
        %v644 = vsel %vm609, %v572, 0
        %v647 = vsel %vm609, %v573, 0
        %v650 = vsel %vm609, %v574, 0
        %v653 = vsel %vm609, %v575, 0
        %v656 = vsel %vm609, %v576, 0
        %658 = vmatprep.subr.bf16.mxu0 0
        %659 = vmatpush1.bf16.msra.mxu0 %v601
        %660 = vmatprep.subr.bf16.mxu0 0
        %661 = vmatpush1.bf16.msra.mxu0 %v602
        %662 = vmatprep.subr.bf16.mxu0 0
        %663 = vmatpush1.bf16.msra.mxu0 %v603
        %664 = vmatprep.subr.bf16.mxu0 0
        %665 = vmatpush1.bf16.msra.mxu0 %v604
        %666 = vmatprep.subr.bf16.mxu0 0
        %667 = vmatpush1.bf16.msra.mxu0 0
        %668 = vmatprep.subr.bf16.mxu0 0
        %669 = vmatpush1.bf16.msra.mxu0 0
        %670 = vmatprep.subr.bf16.mxu0 0
        %671 = vmatpush1.bf16.msra.mxu0 0
        %672 = vmatprep.subr.bf16.mxu0 0
        %673 = vmatpush1.bf16.msra.mxu0 0
        %674 = vmatprep.subr.bf16.mxu0 0
        %675 = vmatpush1.bf16.msra.mxu0 0
        %676 = vmatprep.subr.bf16.mxu0 0
        %677 = vmatpush1.bf16.msra.mxu0 0
        %678 = vmatprep.subr.bf16.mxu0 0
        %679 = vmatpush1.bf16.msra.mxu0 0
        %680 = vmatprep.subr.bf16.mxu0 0
        %681 = vmatpush1.bf16.msra.mxu0 0
        %682 = vmatprep.subr.bf16.mxu0 0
        %683 = vmatpush1.bf16.msra.mxu0 0
        %684 = vmatprep.subr.bf16.mxu0 0
        %685 = vmatpush1.bf16.msra.mxu0 0
        %686 = vmatprep.subr.bf16.mxu0 0
        %687 = vmatpush1.bf16.msra.mxu0 0
        %688 = vmatprep.subr.bf16.mxu0 0
        %689 = vmatpush1.bf16.msra.mxu0 0
        %690 = vmatprep.mubr.bf16.mxu0 0
        %691 = vmatmul.mubr.bf16.gmra.mrb[0].mxu0 %v611
        %v692 = vpop.f32.mrb[0].mxu0
        %v693 = vadd.f32 0.0, %v692
        %v694 = vpop.f32.mrb[0].mxu0
        %v695 = vpop.f32.mrb[0].mxu0
        %v696 = vadd.f32 0.0, %v695
        %v697 = vpop.f32.mrb[0].mxu0
        %698 = vmatprep.mubr.bf16.mxu0 0
        %699 = vmatmul.mubr.bf16.gmra.mrb[0].mxu0 %v614
        %v700 = vpop.f32.mrb[0].mxu0
        %v701 = vadd.f32 0.0, %v700
        %v702 = vpop.f32.mrb[0].mxu0
        %v703 = vpop.f32.mrb[0].mxu0
        %v704 = vadd.f32 0.0, %v703
        %v705 = vpop.f32.mrb[0].mxu0
        %706 = vmatprep.mubr.bf16.mxu0 0
        %707 = vmatmul.mubr.bf16.gmra.mrb[0].mxu0 %v617
        %v708 = vpop.f32.mrb[0].mxu0
        %v709 = vadd.f32 0.0, %v708
        %v710 = vpop.f32.mrb[0].mxu0
        %v711 = vpop.f32.mrb[0].mxu0
        %v712 = vadd.f32 0.0, %v711
        %v713 = vpop.f32.mrb[0].mxu0
        %714 = vmatprep.mubr.bf16.mxu0 0
        %715 = vmatmul.mubr.bf16.gmra.mrb[0].mxu0 %v620
        %v716 = vpop.f32.mrb[0].mxu0
        %v717 = vadd.f32 0.0, %v716
        %v718 = vpop.f32.mrb[0].mxu0
        %v719 = vpop.f32.mrb[0].mxu0
        %v720 = vadd.f32 0.0, %v719
        %v721 = vpop.f32.mrb[0].mxu0
        %722 = vmatprep.mubr.bf16.mxu0 0
        %723 = vmatmul.mubr.bf16.gmra.mrb[0].mxu0 %v623
        %v724 = vpop.f32.mrb[0].mxu0
        %v725 = vadd.f32 0.0, %v724
        %v726 = vpop.f32.mrb[0].mxu0
        %v727 = vpop.f32.mrb[0].mxu0
        %v728 = vadd.f32 0.0, %v727
        %v729 = vpop.f32.mrb[0].mxu0
        %730 = vmatprep.mubr.bf16.mxu0 0
        %731 = vmatmul.mubr.bf16.gmra.mrb[0].mxu0 %v626
        %v732 = vpop.f32.mrb[0].mxu0
        %v733 = vadd.f32 0.0, %v732
        %v734 = vpop.f32.mrb[0].mxu0
        %v735 = vpop.f32.mrb[0].mxu0
        %v736 = vadd.f32 0.0, %v735
        %v737 = vpop.f32.mrb[0].mxu0
        %738 = vmatprep.mubr.bf16.mxu0 0
        %739 = vmatmul.mubr.bf16.gmra.mrb[0].mxu0 %v629
        %v740 = vpop.f32.mrb[0].mxu0
        %v741 = vadd.f32 0.0, %v740
        %v742 = vpop.f32.mrb[0].mxu0
        %v743 = vpop.f32.mrb[0].mxu0
        %v744 = vadd.f32 0.0, %v743
        %v745 = vpop.f32.mrb[0].mxu0
        %746 = vmatprep.mubr.bf16.mxu0 0
        %747 = vmatmul.mubr.bf16.gmra.mrb[0].mxu0 %v632
        %v748 = vpop.f32.mrb[0].mxu0
        %v749 = vadd.f32 0.0, %v748
        %v750 = vpop.f32.mrb[0].mxu0
        %v751 = vpop.f32.mrb[0].mxu0
        %v752 = vadd.f32 0.0, %v751
        %v753 = vpop.f32.mrb[0].mxu0
        %754 = vmatprep.mubr.bf16.mxu0 0
        %755 = vmatmul.mubr.bf16.gmra.mrb[0].mxu0 %v635
        %v756 = vpop.f32.mrb[0].mxu0
        %v757 = vadd.f32 0.0, %v756
        %v758 = vpop.f32.mrb[0].mxu0
        %v759 = vpop.f32.mrb[0].mxu0
        %v760 = vadd.f32 0.0, %v759
        %v761 = vpop.f32.mrb[0].mxu0
        %762 = vmatprep.mubr.bf16.mxu0 0
        %763 = vmatmul.mubr.bf16.gmra.mrb[0].mxu0 %v638
        %v764 = vpop.f32.mrb[0].mxu0
        %v765 = vadd.f32 0.0, %v764
        %v766 = vpop.f32.mrb[0].mxu0
        %v767 = vpop.f32.mrb[0].mxu0
        %v768 = vadd.f32 0.0, %v767
        %v769 = vpop.f32.mrb[0].mxu0
        %770 = vmatprep.mubr.bf16.mxu0 0
        %771 = vmatmul.mubr.bf16.gmra.mrb[0].mxu0 %v641
        %v772 = vpop.f32.mrb[0].mxu0
        %v773 = vadd.f32 0.0, %v772
        %v774 = vpop.f32.mrb[0].mxu0
        %v775 = vpop.f32.mrb[0].mxu0
        %v776 = vadd.f32 0.0, %v775
        %v777 = vpop.f32.mrb[0].mxu0
        %778 = vmatprep.mubr.bf16.mxu0 0
        %779 = vmatmul.mubr.bf16.gmra.mrb[0].mxu0 %v644
        %v780 = vpop.f32.mrb[0].mxu0
        %v781 = vadd.f32 0.0, %v780
        %v782 = vpop.f32.mrb[0].mxu0
        %v783 = vpop.f32.mrb[0].mxu0
        %v784 = vadd.f32 0.0, %v783
        %v785 = vpop.f32.mrb[0].mxu0
        %786 = vmatprep.mubr.bf16.mxu0 0
        %787 = vmatmul.mubr.bf16.gmra.mrb[0].mxu0 %v647
        %v788 = vpop.f32.mrb[0].mxu0
        %v789 = vadd.f32 0.0, %v788
        %v790 = vpop.f32.mrb[0].mxu0
        %v791 = vpop.f32.mrb[0].mxu0
        %v792 = vadd.f32 0.0, %v791
        %v793 = vpop.f32.mrb[0].mxu0
        %794 = vmatprep.mubr.bf16.mxu0 0
        %795 = vmatmul.mubr.bf16.gmra.mrb[0].mxu0 %v650
        %v796 = vpop.f32.mrb[0].mxu0
        %v797 = vadd.f32 0.0, %v796
        %v798 = vpop.f32.mrb[0].mxu0
        %v799 = vpop.f32.mrb[0].mxu0
        %v800 = vadd.f32 0.0, %v799
        %v801 = vpop.f32.mrb[0].mxu0
        %802 = vmatprep.mubr.bf16.mxu0 0
        %803 = vmatmul.mubr.bf16.gmra.mrb[0].mxu0 %v653
        %v804 = vpop.f32.mrb[0].mxu0
        %v805 = vadd.f32 0.0, %v804
        %v806 = vpop.f32.mrb[0].mxu0
        %v807 = vpop.f32.mrb[0].mxu0
        %v808 = vadd.f32 0.0, %v807
        %v809 = vpop.f32.mrb[0].mxu0
        %810 = vmatprep.mubr.bf16.mxu0 0
        %811 = vmatmul.mubr.bf16.gmra.mrb[0].mxu0 %v656
        %v812 = vpop.f32.mrb[0].mxu0
        %v813 = vadd.f32 0.0, %v812
        %v814 = vpop.f32.mrb[0].mxu0
        %v815 = vpop.f32.mrb[0].mxu0
        %v816 = vadd.f32 0.0, %v815
        %v817 = vpop.f32.mrb[0].mxu0
        %818 = vdwg.mxu0
        %v819 = vmul.f32 %v693, 1.442695
        %v820 = vpow.pop %v819
        %v821 = vmul.f32 %v696, 1.442695
        %v822 = vpow.pop %v821
        %v823 = vmul.f32 %v701, 1.442695
        %v824 = vpow.pop %v823
        %v825 = vmul.f32 %v704, 1.442695
        %v826 = vpow.pop %v825
        %v827 = vmul.f32 %v709, 1.442695
        %v828 = vpow.pop %v827
        %v829 = vmul.f32 %v712, 1.442695
        %v830 = vpow.pop %v829
        %v831 = vmul.f32 %v717, 1.442695
        %v832 = vpow.pop %v831
        %v833 = vmul.f32 %v720, 1.442695
        %v834 = vpow.pop %v833
        %v835 = vmul.f32 %v725, 1.442695
        %v836 = vpow.pop %v835
        %v837 = vmul.f32 %v728, 1.442695
        %v838 = vpow.pop %v837
        %v839 = vmul.f32 %v733, 1.442695
        %v840 = vpow.pop %v839
        %v841 = vmul.f32 %v736, 1.442695
        %v842 = vpow.pop %v841
        %v843 = vmul.f32 %v741, 1.442695
        %v844 = vpow.pop %v843
        %v845 = vmul.f32 %v744, 1.442695
        %v846 = vpow.pop %v845
        %v847 = vmul.f32 %v749, 1.442695
        %v848 = vpow.pop %v847
        %v849 = vmul.f32 %v752, 1.442695
        %v850 = vpow.pop %v849
        %v851 = vmul.f32 %v757, 1.442695
        %v852 = vpow.pop %v851
        %v853 = vmul.f32 %v760, 1.442695
        %v854 = vpow.pop %v853
        %v855 = vmul.f32 %v765, 1.442695
        %v856 = vpow.pop %v855
        %v857 = vmul.f32 %v768, 1.442695
        %v858 = vpow.pop %v857
        %v859 = vmul.f32 %v773, 1.442695
        %v860 = vpow.pop %v859
        %v861 = vmul.f32 %v776, 1.442695
        %v862 = vpow.pop %v861
        %v863 = vmul.f32 %v781, 1.442695
        %v864 = vpow.pop %v863
        %v865 = vmul.f32 %v784, 1.442695
        %v866 = vpow.pop %v865
        %v867 = vmul.f32 %v789, 1.442695
        %v868 = vpow.pop %v867
        %v869 = vmul.f32 %v792, 1.442695
        %v870 = vpow.pop %v869
        %v871 = vmul.f32 %v797, 1.442695
        %v872 = vpow.pop %v871
        %v873 = vmul.f32 %v800, 1.442695
        %v874 = vpow.pop %v873
        %v875 = vmul.f32 %v805, 1.442695
        %v876 = vpow.pop %v875
        %v877 = vmul.f32 %v808, 1.442695
        %v878 = vpow.pop %v877
        %v879 = vmul.f32 %v813, 1.442695
        %v880 = vpow.pop %v879
        %v881 = vmul.f32 %v816, 1.442695
        %v882 = vpow.pop %v881
        %915 = vrot.lane.b32.xlu0 %v693, 64
        %v916 = vpop.permute.xlu0 %915
        %917 = vrot.lane.b32.xlu0 %v696, 64
        %v918 = vpop.permute.xlu0 %917
        %919 = vrot.lane.b32.xlu0 %v701, 64
        %v920 = vpop.permute.xlu0 %919
        %921 = vrot.lane.b32.xlu0 %v704, 64
        %v922 = vpop.permute.xlu0 %921
        %923 = vrot.lane.b32.xlu0 %v709, 64
        %v924 = vpop.permute.xlu0 %923
        %925 = vrot.lane.b32.xlu0 %v712, 64
        %v926 = vpop.permute.xlu0 %925
        %927 = vrot.lane.b32.xlu0 %v717, 64
        %v928 = vpop.permute.xlu0 %927
        %929 = vrot.lane.b32.xlu0 %v720, 64
        %v930 = vpop.permute.xlu0 %929
        %931 = vrot.lane.b32.xlu0 %v725, 64
        %v932 = vpop.permute.xlu0 %931
        %933 = vrot.lane.b32.xlu0 %v728, 64
        %v934 = vpop.permute.xlu0 %933
        %935 = vrot.lane.b32.xlu0 %v733, 64
        %v936 = vpop.permute.xlu0 %935
        %937 = vrot.lane.b32.xlu0 %v736, 64
        %v938 = vpop.permute.xlu0 %937
        %939 = vrot.lane.b32.xlu0 %v741, 64
        %v940 = vpop.permute.xlu0 %939
        %941 = vrot.lane.b32.xlu0 %v744, 64
        %v942 = vpop.permute.xlu0 %941
        %943 = vrot.lane.b32.xlu0 %v749, 64
        %v944 = vpop.permute.xlu0 %943
        %945 = vrot.lane.b32.xlu0 %v752, 64
        %v946 = vpop.permute.xlu0 %945
        %947 = vrot.lane.b32.xlu0 %v757, 64
        %v948 = vpop.permute.xlu0 %947
        %949 = vrot.lane.b32.xlu0 %v760, 64
        %v950 = vpop.permute.xlu0 %949
        %951 = vrot.lane.b32.xlu0 %v765, 64
        %v952 = vpop.permute.xlu0 %951
        %953 = vrot.lane.b32.xlu0 %v768, 64
        %v954 = vpop.permute.xlu0 %953
        %955 = vrot.lane.b32.xlu0 %v773, 64
        %v956 = vpop.permute.xlu0 %955
        %957 = vrot.lane.b32.xlu0 %v776, 64
        %v958 = vpop.permute.xlu0 %957
        %959 = vrot.lane.b32.xlu0 %v781, 64
        %v960 = vpop.permute.xlu0 %959
        %961 = vrot.lane.b32.xlu0 %v784, 64
        %v962 = vpop.permute.xlu0 %961
        %963 = vrot.lane.b32.xlu0 %v789, 64
        %v964 = vpop.permute.xlu0 %963
        %965 = vrot.lane.b32.xlu0 %v792, 64
        %v966 = vpop.permute.xlu0 %965
        %967 = vrot.lane.b32.xlu0 %v797, 64
        %v968 = vpop.permute.xlu0 %967
        %969 = vrot.lane.b32.xlu0 %v800, 64
        %v970 = vpop.permute.xlu0 %969
        %971 = vrot.lane.b32.xlu0 %v805, 64
        %v972 = vpop.permute.xlu0 %971
        %973 = vrot.lane.b32.xlu0 %v808, 64
        %v974 = vpop.permute.xlu0 %973
        %975 = vrot.lane.b32.xlu0 %v813, 64
        %v976 = vpop.permute.xlu0 %975
        %977 = vrot.lane.b32.xlu0 %v816, 64
        %v978 = vpop.permute.xlu0 %977
        %v1011 = vadd.f32 %v403, %v916
        %v1012 = vadd.f32 %v406, %v918
        %v1013 = vadd.f32 %v411, %v920
        %v1014 = vadd.f32 %v414, %v922
        %v1015 = vadd.f32 %v419, %v924
        %v1016 = vadd.f32 %v422, %v926
        %v1017 = vadd.f32 %v427, %v928
        %v1018 = vadd.f32 %v430, %v930
        %v1019 = vadd.f32 %v435, %v932
        %v1020 = vadd.f32 %v438, %v934
        %v1021 = vadd.f32 %v443, %v936
        %v1022 = vadd.f32 %v446, %v938
        %v1023 = vadd.f32 %v451, %v940
        %v1024 = vadd.f32 %v454, %v942
        %v1025 = vadd.f32 %v459, %v944
        %v1026 = vadd.f32 %v462, %v946
        %v1027 = vadd.f32 %v467, %v948
        %v1028 = vadd.f32 %v470, %v950
        %v1029 = vadd.f32 %v475, %v952
        %v1030 = vadd.f32 %v478, %v954
        %v1031 = vadd.f32 %v483, %v956
        %v1032 = vadd.f32 %v486, %v958
        %v1033 = vadd.f32 %v491, %v960
        %v1034 = vadd.f32 %v494, %v962
        %v1035 = vadd.f32 %v499, %v964
        %v1036 = vadd.f32 %v502, %v966
        %v1037 = vadd.f32 %v507, %v968
        %v1038 = vadd.f32 %v510, %v970
        %v1039 = vadd.f32 %v515, %v972
        %v1040 = vadd.f32 %v518, %v974
        %v1041 = vadd.f32 %v523, %v976
        %v1042 = vadd.f32 %v526, %v978
        %v1043 = vmax.f32 %v1011, 0.0
        %v1044 = vmax.f32 %v1012, 0.0
        %v1045 = vmax.f32 %v1013, 0.0
        %v1046 = vmax.f32 %v1014, 0.0
        %v1047 = vmax.f32 %v1015, 0.0
        %v1048 = vmax.f32 %v1016, 0.0
        %v1049 = vmax.f32 %v1017, 0.0
        %v1050 = vmax.f32 %v1018, 0.0
        %v1051 = vmax.f32 %v1019, 0.0
        %v1052 = vmax.f32 %v1020, 0.0
        %v1053 = vmax.f32 %v1021, 0.0
        %v1054 = vmax.f32 %v1022, 0.0
        %v1055 = vmax.f32 %v1023, 0.0
        %v1056 = vmax.f32 %v1024, 0.0
        %v1057 = vmax.f32 %v1025, 0.0
        %v1058 = vmax.f32 %v1026, 0.0
        %v1059 = vmax.f32 %v1027, 0.0
        %v1060 = vmax.f32 %v1028, 0.0
        %v1061 = vmax.f32 %v1029, 0.0
        %v1062 = vmax.f32 %v1030, 0.0
        %v1063 = vmax.f32 %v1031, 0.0
        %v1064 = vmax.f32 %v1032, 0.0
        %v1065 = vmax.f32 %v1033, 0.0
        %v1066 = vmax.f32 %v1034, 0.0
        %v1067 = vmax.f32 %v1035, 0.0
        %v1068 = vmax.f32 %v1036, 0.0
        %v1069 = vmax.f32 %v1037, 0.0
        %v1070 = vmax.f32 %v1038, 0.0
        %v1071 = vmax.f32 %v1039, 0.0
        %v1072 = vmax.f32 %v1040, 0.0
        %v1073 = vmax.f32 %v1041, 0.0
        %v1074 = vmax.f32 %v1042, 0.0
        %v1075 = vpack.c.bf16 %v1044, %v1043
        %v1076 = vpack.c.bf16 %v1046, %v1045
        %v1077 = vpack.c.bf16 %v1048, %v1047
        %v1078 = vpack.c.bf16 %v1050, %v1049
        %v1079 = vpack.c.bf16 %v1052, %v1051
        %v1080 = vpack.c.bf16 %v1054, %v1053
        %v1081 = vpack.c.bf16 %v1056, %v1055
        %v1082 = vpack.c.bf16 %v1058, %v1057
        %v1083 = vpack.c.bf16 %v1060, %v1059
        %v1084 = vpack.c.bf16 %v1062, %v1061
        %v1085 = vpack.c.bf16 %v1064, %v1063
        %v1086 = vpack.c.bf16 %v1066, %v1065
        %v1087 = vpack.c.bf16 %v1068, %v1067
        %v1088 = vpack.c.bf16 %v1070, %v1069
        %v1089 = vpack.c.bf16 %v1072, %v1071
        %v1090 = vpack.c.bf16 %v1074, %v1073
        %v1091 = vld [vmem:[%s3] sm:$0xf]
        %v1092 = vld [vmem:[%s3 + $0x4] sm:$0xf]
        %v1093 = vld [vmem:[%s3 + $0x8] sm:$0xf]
        %v1094 = vld [vmem:[%s3 + $0xc] sm:$0xf]
        %v1095 = vld [vmem:[%s3 + $0x10] sm:$0xf]
        %v1096 = vld [vmem:[%s3 + $0x14] sm:$0xf]
        %v1097 = vld [vmem:[%s3 + $0x18] sm:$0xf]
        %v1098 = vld [vmem:[%s3 + $0x1c] sm:$0xf]
        %1115 = vrot.lane.b32.xlu0 %v1075, 64
        %v1116 = vpop.permute.xlu0 %1115
        %1117 = vrot.lane.b32.xlu0 %v1076, 64
        %v1118 = vpop.permute.xlu0 %1117
        %1119 = vrot.lane.b32.xlu0 %v1077, 64
        %v1120 = vpop.permute.xlu0 %1119
        %1121 = vrot.lane.b32.xlu0 %v1078, 64
        %v1122 = vpop.permute.xlu0 %1121
        %1123 = vrot.lane.b32.xlu0 %v1079, 64
        %v1124 = vpop.permute.xlu0 %1123
        %1125 = vrot.lane.b32.xlu0 %v1080, 64
        %v1126 = vpop.permute.xlu0 %1125
        %1127 = vrot.lane.b32.xlu0 %v1081, 64
        %v1128 = vpop.permute.xlu0 %1127
        %1129 = vrot.lane.b32.xlu0 %v1082, 64
        %v1130 = vpop.permute.xlu0 %1129
        %1131 = vrot.lane.b32.xlu0 %v1083, 64
        %v1132 = vpop.permute.xlu0 %1131
        %1133 = vrot.lane.b32.xlu0 %v1084, 64
        %v1134 = vpop.permute.xlu0 %1133
        %1135 = vrot.lane.b32.xlu0 %v1085, 64
        %v1136 = vpop.permute.xlu0 %1135
        %1137 = vrot.lane.b32.xlu0 %v1086, 64
        %v1138 = vpop.permute.xlu0 %1137
        %1139 = vrot.lane.b32.xlu0 %v1087, 64
        %v1140 = vpop.permute.xlu0 %1139
        %1141 = vrot.lane.b32.xlu0 %v1088, 64
        %v1142 = vpop.permute.xlu0 %1141
        %1143 = vrot.lane.b32.xlu0 %v1089, 64
        %v1144 = vpop.permute.xlu0 %1143
        %1145 = vrot.lane.b32.xlu0 %v1090, 64
        %v1146 = vpop.permute.xlu0 %1145
        %v1155 = vunpack.c.l.b16 %v1091
        %v1156 = vunpack.c.l.b16 %v1092
        %v1157 = vunpack.c.l.b16 %v1093
        %v1158 = vunpack.c.l.b16 %v1094
        %v1159 = vunpack.c.l.b16 %v1095
        %v1160 = vunpack.c.l.b16 %v1096
        %v1161 = vunpack.c.l.b16 %v1097
        %v1162 = vunpack.c.l.b16 %v1098
        %v1163 = vpack.c.b16 %v1156, %v1155
        %v1164 = vpack.c.b16 %v1158, %v1157
        %v1165 = vpack.c.b16 %v1160, %v1159
        %v1166 = vpack.c.b16 %v1162, %v1161
        %v1172 = vsel %vm609, %v1116, 0
        %v1175 = vsel %vm609, %v1118, 0
        %v1178 = vsel %vm609, %v1120, 0
        %v1181 = vsel %vm609, %v1122, 0
        %v1184 = vsel %vm609, %v1124, 0
        %v1187 = vsel %vm609, %v1126, 0
        %v1190 = vsel %vm609, %v1128, 0
        %v1193 = vsel %vm609, %v1130, 0
        %v1196 = vsel %vm609, %v1132, 0
        %v1199 = vsel %vm609, %v1134, 0
        %v1202 = vsel %vm609, %v1136, 0
        %v1205 = vsel %vm609, %v1138, 0
        %v1208 = vsel %vm609, %v1140, 0
        %v1211 = vsel %vm609, %v1142, 0
        %v1214 = vsel %vm609, %v1144, 0
        %v1217 = vsel %vm609, %v1146, 0
        %1219 = vmatprep.subr.bf16.mxu0 0
        %1220 = vmatpush1.bf16.msra.mxu0 %v1163
        %1221 = vmatprep.subr.bf16.mxu0 0
        %1222 = vmatpush1.bf16.msra.mxu0 %v1164
        %1223 = vmatprep.subr.bf16.mxu0 0
        %1224 = vmatpush1.bf16.msra.mxu0 %v1165
        %1225 = vmatprep.subr.bf16.mxu0 0
        %1226 = vmatpush1.bf16.msra.mxu0 %v1166
        %1227 = vmatprep.subr.bf16.mxu0 0
        %1228 = vmatpush1.bf16.msra.mxu0 0
        %1229 = vmatprep.subr.bf16.mxu0 0
        %1230 = vmatpush1.bf16.msra.mxu0 0
        %1231 = vmatprep.subr.bf16.mxu0 0
        %1232 = vmatpush1.bf16.msra.mxu0 0
        %1233 = vmatprep.subr.bf16.mxu0 0
        %1234 = vmatpush1.bf16.msra.mxu0 0
        %1235 = vmatprep.subr.bf16.mxu0 0
        %1236 = vmatpush1.bf16.msra.mxu0 0
        %1237 = vmatprep.subr.bf16.mxu0 0
        %1238 = vmatpush1.bf16.msra.mxu0 0
        %1239 = vmatprep.subr.bf16.mxu0 0
        %1240 = vmatpush1.bf16.msra.mxu0 0
        %1241 = vmatprep.subr.bf16.mxu0 0
        %1242 = vmatpush1.bf16.msra.mxu0 0
        %1243 = vmatprep.subr.bf16.mxu0 0
        %1244 = vmatpush1.bf16.msra.mxu0 0
        %1245 = vmatprep.subr.bf16.mxu0 0
        %1246 = vmatpush1.bf16.msra.mxu0 0
        %1247 = vmatprep.subr.bf16.mxu0 0
        %1248 = vmatpush1.bf16.msra.mxu0 0
        %1249 = vmatprep.subr.bf16.mxu0 0
        %1250 = vmatpush1.bf16.msra.mxu0 0
        %1251 = vmatprep.mubr.bf16.mxu0 0
        %1252 = vmatmul.mubr.bf16.gmra.mrb[0].mxu0 %v1172
        %v1253 = vpop.f32.mrb[0].mxu0
        %v1254 = vadd.f32 0.0, %v1253
        %v1255 = vpop.f32.mrb[0].mxu0
        %v1256 = vpop.f32.mrb[0].mxu0
        %v1257 = vadd.f32 0.0, %v1256
        %v1258 = vpop.f32.mrb[0].mxu0
        %1259 = vmatprep.mubr.bf16.mxu0 0
        %1260 = vmatmul.mubr.bf16.gmra.mrb[0].mxu0 %v1175
        %v1261 = vpop.f32.mrb[0].mxu0
        %v1262 = vadd.f32 0.0, %v1261
        %v1263 = vpop.f32.mrb[0].mxu0
        %v1264 = vpop.f32.mrb[0].mxu0
        %v1265 = vadd.f32 0.0, %v1264
        %v1266 = vpop.f32.mrb[0].mxu0
        %1267 = vmatprep.mubr.bf16.mxu0 0
        %1268 = vmatmul.mubr.bf16.gmra.mrb[0].mxu0 %v1178
        %v1269 = vpop.f32.mrb[0].mxu0
        %v1270 = vadd.f32 0.0, %v1269
        %v1271 = vpop.f32.mrb[0].mxu0
        %v1272 = vpop.f32.mrb[0].mxu0
        %v1273 = vadd.f32 0.0, %v1272
        %v1274 = vpop.f32.mrb[0].mxu0
        %1275 = vmatprep.mubr.bf16.mxu0 0
        %1276 = vmatmul.mubr.bf16.gmra.mrb[0].mxu0 %v1181
        %v1277 = vpop.f32.mrb[0].mxu0
        %v1278 = vadd.f32 0.0, %v1277
        %v1279 = vpop.f32.mrb[0].mxu0
        %v1280 = vpop.f32.mrb[0].mxu0
        %v1281 = vadd.f32 0.0, %v1280
        %v1282 = vpop.f32.mrb[0].mxu0
        %1283 = vmatprep.mubr.bf16.mxu0 0
        %1284 = vmatmul.mubr.bf16.gmra.mrb[0].mxu0 %v1184
        %v1285 = vpop.f32.mrb[0].mxu0
        %v1286 = vadd.f32 0.0, %v1285
        %v1287 = vpop.f32.mrb[0].mxu0
        %v1288 = vpop.f32.mrb[0].mxu0
        %v1289 = vadd.f32 0.0, %v1288
        %v1290 = vpop.f32.mrb[0].mxu0
        %1291 = vmatprep.mubr.bf16.mxu0 0
        %1292 = vmatmul.mubr.bf16.gmra.mrb[0].mxu0 %v1187
        %v1293 = vpop.f32.mrb[0].mxu0
        %v1294 = vadd.f32 0.0, %v1293
        %v1295 = vpop.f32.mrb[0].mxu0
        %v1296 = vpop.f32.mrb[0].mxu0
        %v1297 = vadd.f32 0.0, %v1296
        %v1298 = vpop.f32.mrb[0].mxu0
        %1299 = vmatprep.mubr.bf16.mxu0 0
        %1300 = vmatmul.mubr.bf16.gmra.mrb[0].mxu0 %v1190
        %v1301 = vpop.f32.mrb[0].mxu0
        %v1302 = vadd.f32 0.0, %v1301
        %v1303 = vpop.f32.mrb[0].mxu0
        %v1304 = vpop.f32.mrb[0].mxu0
        %v1305 = vadd.f32 0.0, %v1304
        %v1306 = vpop.f32.mrb[0].mxu0
        %1307 = vmatprep.mubr.bf16.mxu0 0
        %1308 = vmatmul.mubr.bf16.gmra.mrb[0].mxu0 %v1193
        %v1309 = vpop.f32.mrb[0].mxu0
        %v1310 = vadd.f32 0.0, %v1309
        %v1311 = vpop.f32.mrb[0].mxu0
        %v1312 = vpop.f32.mrb[0].mxu0
        %v1313 = vadd.f32 0.0, %v1312
        %v1314 = vpop.f32.mrb[0].mxu0
        %1315 = vmatprep.mubr.bf16.mxu0 0
        %1316 = vmatmul.mubr.bf16.gmra.mrb[0].mxu0 %v1196
        %v1317 = vpop.f32.mrb[0].mxu0
        %v1318 = vadd.f32 0.0, %v1317
        %v1319 = vpop.f32.mrb[0].mxu0
        %v1320 = vpop.f32.mrb[0].mxu0
        %v1321 = vadd.f32 0.0, %v1320
        %v1322 = vpop.f32.mrb[0].mxu0
        %1323 = vmatprep.mubr.bf16.mxu0 0
        %1324 = vmatmul.mubr.bf16.gmra.mrb[0].mxu0 %v1199
        %v1325 = vpop.f32.mrb[0].mxu0
        %v1326 = vadd.f32 0.0, %v1325
        %v1327 = vpop.f32.mrb[0].mxu0
        %v1328 = vpop.f32.mrb[0].mxu0
        %v1329 = vadd.f32 0.0, %v1328
        %v1330 = vpop.f32.mrb[0].mxu0
        %1331 = vmatprep.mubr.bf16.mxu0 0
        %1332 = vmatmul.mubr.bf16.gmra.mrb[0].mxu0 %v1202
        %v1333 = vpop.f32.mrb[0].mxu0
        %v1334 = vadd.f32 0.0, %v1333
        %v1335 = vpop.f32.mrb[0].mxu0
        %v1336 = vpop.f32.mrb[0].mxu0
        %v1337 = vadd.f32 0.0, %v1336
        %v1338 = vpop.f32.mrb[0].mxu0
        %1339 = vmatprep.mubr.bf16.mxu0 0
        %1340 = vmatmul.mubr.bf16.gmra.mrb[0].mxu0 %v1205
        %v1341 = vpop.f32.mrb[0].mxu0
        %v1342 = vadd.f32 0.0, %v1341
        %v1343 = vpop.f32.mrb[0].mxu0
        %v1344 = vpop.f32.mrb[0].mxu0
        %v1345 = vadd.f32 0.0, %v1344
        %v1346 = vpop.f32.mrb[0].mxu0
        %1347 = vmatprep.mubr.bf16.mxu0 0
        %1348 = vmatmul.mubr.bf16.gmra.mrb[0].mxu0 %v1208
        %v1349 = vpop.f32.mrb[0].mxu0
        %v1350 = vadd.f32 0.0, %v1349
        %v1351 = vpop.f32.mrb[0].mxu0
        %v1352 = vpop.f32.mrb[0].mxu0
        %v1353 = vadd.f32 0.0, %v1352
        %v1354 = vpop.f32.mrb[0].mxu0
        %1355 = vmatprep.mubr.bf16.mxu0 0
        %1356 = vmatmul.mubr.bf16.gmra.mrb[0].mxu0 %v1211
        %v1357 = vpop.f32.mrb[0].mxu0
        %v1358 = vadd.f32 0.0, %v1357
        %v1359 = vpop.f32.mrb[0].mxu0
        %v1360 = vpop.f32.mrb[0].mxu0
        %v1361 = vadd.f32 0.0, %v1360
        %v1362 = vpop.f32.mrb[0].mxu0
        %1363 = vmatprep.mubr.bf16.mxu0 0
        %1364 = vmatmul.mubr.bf16.gmra.mrb[0].mxu0 %v1214
        %v1365 = vpop.f32.mrb[0].mxu0
        %v1366 = vadd.f32 0.0, %v1365
        %v1367 = vpop.f32.mrb[0].mxu0
        %v1368 = vpop.f32.mrb[0].mxu0
        %v1369 = vadd.f32 0.0, %v1368
        %v1370 = vpop.f32.mrb[0].mxu0
        %1371 = vmatprep.mubr.bf16.mxu0 0
        %1372 = vmatmul.mubr.bf16.gmra.mrb[0].mxu0 %v1217
        %v1373 = vpop.f32.mrb[0].mxu0
        %v1374 = vadd.f32 0.0, %v1373
        %v1375 = vpop.f32.mrb[0].mxu0
        %v1376 = vpop.f32.mrb[0].mxu0
        %v1377 = vadd.f32 0.0, %v1376
        %v1378 = vpop.f32.mrb[0].mxu0
        %1379 = vdwg.mxu0
        %v1380 = vmax.f32 %v1254, 0.0
        %v1381 = vmax.f32 %v1257, 0.0
        %v1382 = vmax.f32 %v1262, 0.0
        %v1383 = vmax.f32 %v1265, 0.0
        %v1384 = vmax.f32 %v1270, 0.0
        %v1385 = vmax.f32 %v1273, 0.0
        %v1386 = vmax.f32 %v1278, 0.0
        %v1387 = vmax.f32 %v1281, 0.0
        %v1388 = vmax.f32 %v1286, 0.0
        %v1389 = vmax.f32 %v1289, 0.0
        %v1390 = vmax.f32 %v1294, 0.0
        %v1391 = vmax.f32 %v1297, 0.0
        %v1392 = vmax.f32 %v1302, 0.0
        %v1393 = vmax.f32 %v1305, 0.0
        %v1394 = vmax.f32 %v1310, 0.0
        %v1395 = vmax.f32 %v1313, 0.0
        %v1396 = vmax.f32 %v1318, 0.0
        %v1397 = vmax.f32 %v1321, 0.0
        %v1398 = vmax.f32 %v1326, 0.0
        %v1399 = vmax.f32 %v1329, 0.0
        %v1400 = vmax.f32 %v1334, 0.0
        %v1401 = vmax.f32 %v1337, 0.0
        %v1402 = vmax.f32 %v1342, 0.0
        %v1403 = vmax.f32 %v1345, 0.0
        %v1404 = vmax.f32 %v1350, 0.0
        %v1405 = vmax.f32 %v1353, 0.0
        %v1406 = vmax.f32 %v1358, 0.0
        %v1407 = vmax.f32 %v1361, 0.0
        %v1408 = vmax.f32 %v1366, 0.0
        %v1409 = vmax.f32 %v1369, 0.0
        %v1410 = vmax.f32 %v1374, 0.0
        %v1411 = vmax.f32 %v1377, 0.0
        %v1412 = vpack.c.bf16 %v1381, %v1380
        %v1413 = vpack.c.bf16 %v1383, %v1382
        %v1414 = vpack.c.bf16 %v1385, %v1384
        %v1415 = vpack.c.bf16 %v1387, %v1386
        %v1416 = vpack.c.bf16 %v1389, %v1388
        %v1417 = vpack.c.bf16 %v1391, %v1390
        %v1418 = vpack.c.bf16 %v1393, %v1392
        %v1419 = vpack.c.bf16 %v1395, %v1394
        %v1420 = vpack.c.bf16 %v1397, %v1396
        %v1421 = vpack.c.bf16 %v1399, %v1398
        %v1422 = vpack.c.bf16 %v1401, %v1400
        %v1423 = vpack.c.bf16 %v1403, %v1402
        %v1424 = vpack.c.bf16 %v1405, %v1404
        %v1425 = vpack.c.bf16 %v1407, %v1406
        %v1426 = vpack.c.bf16 %v1409, %v1408
        %v1427 = vpack.c.bf16 %v1411, %v1410
        %v1428 = vld [vmem:[%s4] sm:$0xf]
        %v1429 = vld [vmem:[%s4 + $0x4] sm:$0xf]
        %v1430 = vld [vmem:[%s4 + $0x8] sm:$0xf]
        %v1431 = vld [vmem:[%s4 + $0xc] sm:$0xf]
        %v1432 = vld [vmem:[%s4 + $0x10] sm:$0xf]
        %v1433 = vld [vmem:[%s4 + $0x14] sm:$0xf]
        %v1434 = vld [vmem:[%s4 + $0x18] sm:$0xf]
        %v1435 = vld [vmem:[%s4 + $0x1c] sm:$0xf]
        %v1444 = vunpack.c.l.b16 %v1428
        %v1445 = vunpack.c.l.b16 %v1429
        %v1446 = vunpack.c.l.b16 %v1430
        %v1447 = vunpack.c.l.b16 %v1431
        %v1448 = vunpack.c.l.b16 %v1432
        %v1449 = vunpack.c.l.b16 %v1433
        %v1450 = vunpack.c.l.b16 %v1434
        %v1451 = vunpack.c.l.b16 %v1435
        %v1452 = vpack.c.b16 %v1445, %v1444
        %v1453 = vpack.c.b16 %v1447, %v1446
        %v1454 = vpack.c.b16 %v1449, %v1448
        %v1455 = vpack.c.b16 %v1451, %v1450
        %v1461 = vsel %vm609, %v1412, 0
        %v1464 = vsel %vm609, %v1413, 0
        %v1467 = vsel %vm609, %v1414, 0
        %v1470 = vsel %vm609, %v1415, 0
        %v1473 = vsel %vm609, %v1416, 0
        %v1476 = vsel %vm609, %v1417, 0
        %v1479 = vsel %vm609, %v1418, 0
        %v1482 = vsel %vm609, %v1419, 0
        %v1485 = vsel %vm609, %v1420, 0
        %v1488 = vsel %vm609, %v1421, 0
        %v1491 = vsel %vm609, %v1422, 0
        %v1494 = vsel %vm609, %v1423, 0
        %v1497 = vsel %vm609, %v1424, 0
        %v1500 = vsel %vm609, %v1425, 0
        %v1503 = vsel %vm609, %v1426, 0
        %v1506 = vsel %vm609, %v1427, 0
        %1508 = vmatprep.subr.bf16.mxu0 0
        %1509 = vmatpush1.bf16.msra.mxu0 %v1452
        %1510 = vmatprep.subr.bf16.mxu0 0
        %1511 = vmatpush1.bf16.msra.mxu0 %v1453
        %1512 = vmatprep.subr.bf16.mxu0 0
        %1513 = vmatpush1.bf16.msra.mxu0 %v1454
        %1514 = vmatprep.subr.bf16.mxu0 0
        %1515 = vmatpush1.bf16.msra.mxu0 %v1455
        %1516 = vmatprep.subr.bf16.mxu0 0
        %1517 = vmatpush1.bf16.msra.mxu0 0
        %1518 = vmatprep.subr.bf16.mxu0 0
        %1519 = vmatpush1.bf16.msra.mxu0 0
        %1520 = vmatprep.subr.bf16.mxu0 0
        %1521 = vmatpush1.bf16.msra.mxu0 0
        %1522 = vmatprep.subr.bf16.mxu0 0
        %1523 = vmatpush1.bf16.msra.mxu0 0
        %1524 = vmatprep.subr.bf16.mxu0 0
        %1525 = vmatpush1.bf16.msra.mxu0 0
        %1526 = vmatprep.subr.bf16.mxu0 0
        %1527 = vmatpush1.bf16.msra.mxu0 0
        %1528 = vmatprep.subr.bf16.mxu0 0
        %1529 = vmatpush1.bf16.msra.mxu0 0
        %1530 = vmatprep.subr.bf16.mxu0 0
        %1531 = vmatpush1.bf16.msra.mxu0 0
        %1532 = vmatprep.subr.bf16.mxu0 0
        %1533 = vmatpush1.bf16.msra.mxu0 0
        %1534 = vmatprep.subr.bf16.mxu0 0
        %1535 = vmatpush1.bf16.msra.mxu0 0
        %1536 = vmatprep.subr.bf16.mxu0 0
        %1537 = vmatpush1.bf16.msra.mxu0 0
        %1538 = vmatprep.subr.bf16.mxu0 0
        %1539 = vmatpush1.bf16.msra.mxu0 0
        %1540 = vmatprep.mubr.bf16.mxu0 0
        %1541 = vmatmul.mubr.bf16.gmra.mrb[0].mxu0 %v1461
        %v1542 = vpop.f32.mrb[0].mxu0
        %v1543 = vadd.f32 0.0, %v1542
        %v1544 = vpop.f32.mrb[0].mxu0
        %v1545 = vpop.f32.mrb[0].mxu0
        %v1546 = vadd.f32 0.0, %v1545
        %v1547 = vpop.f32.mrb[0].mxu0
        %1548 = vmatprep.mubr.bf16.mxu0 0
        %1549 = vmatmul.mubr.bf16.gmra.mrb[0].mxu0 %v1464
        %v1550 = vpop.f32.mrb[0].mxu0
        %v1551 = vadd.f32 0.0, %v1550
        %v1552 = vpop.f32.mrb[0].mxu0
        %v1553 = vpop.f32.mrb[0].mxu0
        %v1554 = vadd.f32 0.0, %v1553
        %v1555 = vpop.f32.mrb[0].mxu0
        %1556 = vmatprep.mubr.bf16.mxu0 0
        %1557 = vmatmul.mubr.bf16.gmra.mrb[0].mxu0 %v1467
        %v1558 = vpop.f32.mrb[0].mxu0
        %v1559 = vadd.f32 0.0, %v1558
        %v1560 = vpop.f32.mrb[0].mxu0
        %v1561 = vpop.f32.mrb[0].mxu0
        %v1562 = vadd.f32 0.0, %v1561
        %v1563 = vpop.f32.mrb[0].mxu0
        %1564 = vmatprep.mubr.bf16.mxu0 0
        %1565 = vmatmul.mubr.bf16.gmra.mrb[0].mxu0 %v1470
        %v1566 = vpop.f32.mrb[0].mxu0
        %v1567 = vadd.f32 0.0, %v1566
        %v1568 = vpop.f32.mrb[0].mxu0
        %v1569 = vpop.f32.mrb[0].mxu0
        %v1570 = vadd.f32 0.0, %v1569
        %v1571 = vpop.f32.mrb[0].mxu0
        %1572 = vmatprep.mubr.bf16.mxu0 0
        %1573 = vmatmul.mubr.bf16.gmra.mrb[0].mxu0 %v1473
        %v1574 = vpop.f32.mrb[0].mxu0
        %v1575 = vadd.f32 0.0, %v1574
        %v1576 = vpop.f32.mrb[0].mxu0
        %v1577 = vpop.f32.mrb[0].mxu0
        %v1578 = vadd.f32 0.0, %v1577
        %v1579 = vpop.f32.mrb[0].mxu0
        %1580 = vmatprep.mubr.bf16.mxu0 0
        %1581 = vmatmul.mubr.bf16.gmra.mrb[0].mxu0 %v1476
        %v1582 = vpop.f32.mrb[0].mxu0
        %v1583 = vadd.f32 0.0, %v1582
        %v1584 = vpop.f32.mrb[0].mxu0
        %v1585 = vpop.f32.mrb[0].mxu0
        %v1586 = vadd.f32 0.0, %v1585
        %v1587 = vpop.f32.mrb[0].mxu0
        %1588 = vmatprep.mubr.bf16.mxu0 0
        %1589 = vmatmul.mubr.bf16.gmra.mrb[0].mxu0 %v1479
        %v1590 = vpop.f32.mrb[0].mxu0
        %v1591 = vadd.f32 0.0, %v1590
        %v1592 = vpop.f32.mrb[0].mxu0
        %v1593 = vpop.f32.mrb[0].mxu0
        %v1594 = vadd.f32 0.0, %v1593
        %v1595 = vpop.f32.mrb[0].mxu0
        %1596 = vmatprep.mubr.bf16.mxu0 0
        %1597 = vmatmul.mubr.bf16.gmra.mrb[0].mxu0 %v1482
        %v1598 = vpop.f32.mrb[0].mxu0
        %v1599 = vadd.f32 0.0, %v1598
        %v1600 = vpop.f32.mrb[0].mxu0
        %v1601 = vpop.f32.mrb[0].mxu0
        %v1602 = vadd.f32 0.0, %v1601
        %v1603 = vpop.f32.mrb[0].mxu0
        %1604 = vmatprep.mubr.bf16.mxu0 0
        %1605 = vmatmul.mubr.bf16.gmra.mrb[0].mxu0 %v1485
        %v1606 = vpop.f32.mrb[0].mxu0
        %v1607 = vadd.f32 0.0, %v1606
        %v1608 = vpop.f32.mrb[0].mxu0
        %v1609 = vpop.f32.mrb[0].mxu0
        %v1610 = vadd.f32 0.0, %v1609
        %v1611 = vpop.f32.mrb[0].mxu0
        %1612 = vmatprep.mubr.bf16.mxu0 0
        %1613 = vmatmul.mubr.bf16.gmra.mrb[0].mxu0 %v1488
        %v1614 = vpop.f32.mrb[0].mxu0
        %v1615 = vadd.f32 0.0, %v1614
        %v1616 = vpop.f32.mrb[0].mxu0
        %v1617 = vpop.f32.mrb[0].mxu0
        %v1618 = vadd.f32 0.0, %v1617
        %v1619 = vpop.f32.mrb[0].mxu0
        %1620 = vmatprep.mubr.bf16.mxu0 0
        %1621 = vmatmul.mubr.bf16.gmra.mrb[0].mxu0 %v1491
        %v1622 = vpop.f32.mrb[0].mxu0
        %v1623 = vadd.f32 0.0, %v1622
        %v1624 = vpop.f32.mrb[0].mxu0
        %v1625 = vpop.f32.mrb[0].mxu0
        %v1626 = vadd.f32 0.0, %v1625
        %v1627 = vpop.f32.mrb[0].mxu0
        %1628 = vmatprep.mubr.bf16.mxu0 0
        %1629 = vmatmul.mubr.bf16.gmra.mrb[0].mxu0 %v1494
        %v1630 = vpop.f32.mrb[0].mxu0
        %v1631 = vadd.f32 0.0, %v1630
        %v1632 = vpop.f32.mrb[0].mxu0
        %v1633 = vpop.f32.mrb[0].mxu0
        %v1634 = vadd.f32 0.0, %v1633
        %v1635 = vpop.f32.mrb[0].mxu0
        %1636 = vmatprep.mubr.bf16.mxu0 0
        %1637 = vmatmul.mubr.bf16.gmra.mrb[0].mxu0 %v1497
        %v1638 = vpop.f32.mrb[0].mxu0
        %v1639 = vadd.f32 0.0, %v1638
        %v1640 = vpop.f32.mrb[0].mxu0
        %v1641 = vpop.f32.mrb[0].mxu0
        %v1642 = vadd.f32 0.0, %v1641
        %v1643 = vpop.f32.mrb[0].mxu0
        %1644 = vmatprep.mubr.bf16.mxu0 0
        %1645 = vmatmul.mubr.bf16.gmra.mrb[0].mxu0 %v1500
        %v1646 = vpop.f32.mrb[0].mxu0
        %v1647 = vadd.f32 0.0, %v1646
        %v1648 = vpop.f32.mrb[0].mxu0
        %v1649 = vpop.f32.mrb[0].mxu0
        %v1650 = vadd.f32 0.0, %v1649
        %v1651 = vpop.f32.mrb[0].mxu0
        %1652 = vmatprep.mubr.bf16.mxu0 0
        %1653 = vmatmul.mubr.bf16.gmra.mrb[0].mxu0 %v1503
        %v1654 = vpop.f32.mrb[0].mxu0
        %v1655 = vadd.f32 0.0, %v1654
        %v1656 = vpop.f32.mrb[0].mxu0
        %v1657 = vpop.f32.mrb[0].mxu0
        %v1658 = vadd.f32 0.0, %v1657
        %v1659 = vpop.f32.mrb[0].mxu0
        %1660 = vmatprep.mubr.bf16.mxu0 0
        %1661 = vmatmul.mubr.bf16.gmra.mrb[0].mxu0 %v1506
        %v1662 = vpop.f32.mrb[0].mxu0
        %v1663 = vadd.f32 0.0, %v1662
        %v1664 = vpop.f32.mrb[0].mxu0
        %v1665 = vpop.f32.mrb[0].mxu0
        %v1666 = vadd.f32 0.0, %v1665
        %v1667 = vpop.f32.mrb[0].mxu0
        %1668 = vdwg.mxu0
        %v1669 = vxor.u32 %v1543, 2147483648
        %v1670 = vxor.u32 %v1546, 2147483648
        %v1671 = vxor.u32 %v1551, 2147483648
        %v1672 = vxor.u32 %v1554, 2147483648
        %v1673 = vxor.u32 %v1559, 2147483648
        %v1674 = vxor.u32 %v1562, 2147483648
        %v1675 = vxor.u32 %v1567, 2147483648
        %v1676 = vxor.u32 %v1570, 2147483648
        %v1677 = vxor.u32 %v1575, 2147483648
        %v1678 = vxor.u32 %v1578, 2147483648
        %v1679 = vxor.u32 %v1583, 2147483648
        %v1680 = vxor.u32 %v1586, 2147483648
        %v1681 = vxor.u32 %v1591, 2147483648
        %v1682 = vxor.u32 %v1594, 2147483648
        %v1683 = vxor.u32 %v1599, 2147483648
        %v1684 = vxor.u32 %v1602, 2147483648
        %v1685 = vxor.u32 %v1607, 2147483648
        %v1686 = vxor.u32 %v1610, 2147483648
        %v1687 = vxor.u32 %v1615, 2147483648
        %v1688 = vxor.u32 %v1618, 2147483648
        %v1689 = vxor.u32 %v1623, 2147483648
        %v1690 = vxor.u32 %v1626, 2147483648
        %v1691 = vxor.u32 %v1631, 2147483648
        %v1692 = vxor.u32 %v1634, 2147483648
        %v1693 = vxor.u32 %v1639, 2147483648
        %v1694 = vxor.u32 %v1642, 2147483648
        %v1695 = vxor.u32 %v1647, 2147483648
        %v1696 = vxor.u32 %v1650, 2147483648
        %v1697 = vxor.u32 %v1655, 2147483648
        %v1698 = vxor.u32 %v1658, 2147483648
        %v1699 = vxor.u32 %v1663, 2147483648
        %v1700 = vxor.u32 %v1666, 2147483648
        %v1701 = vmul.f32 %v1669, 1.442695
        %v1702 = vpow.pop %v1701
        %v1703 = vmul.f32 %v1670, 1.442695
        %v1704 = vpow.pop %v1703
        %v1705 = vmul.f32 %v1671, 1.442695
        %v1706 = vpow.pop %v1705
        %v1707 = vmul.f32 %v1672, 1.442695
        %v1708 = vpow.pop %v1707
        %v1709 = vmul.f32 %v1673, 1.442695
        %v1710 = vpow.pop %v1709
        %v1711 = vmul.f32 %v1674, 1.442695
        %v1712 = vpow.pop %v1711
        %v1713 = vmul.f32 %v1675, 1.442695
        %v1714 = vpow.pop %v1713
        %v1715 = vmul.f32 %v1676, 1.442695
        %v1716 = vpow.pop %v1715
        %v1717 = vmul.f32 %v1677, 1.442695
        %v1718 = vpow.pop %v1717
        %v1719 = vmul.f32 %v1678, 1.442695
        %v1720 = vpow.pop %v1719
        %v1721 = vmul.f32 %v1679, 1.442695
        %v1722 = vpow.pop %v1721
        %v1723 = vmul.f32 %v1680, 1.442695
        %v1724 = vpow.pop %v1723
        %v1725 = vmul.f32 %v1681, 1.442695
        %v1726 = vpow.pop %v1725
        %v1727 = vmul.f32 %v1682, 1.442695
        %v1728 = vpow.pop %v1727
        %v1729 = vmul.f32 %v1683, 1.442695
        %v1730 = vpow.pop %v1729
        %v1731 = vmul.f32 %v1684, 1.442695
        %v1732 = vpow.pop %v1731
        %v1733 = vmul.f32 %v1685, 1.442695
        %v1734 = vpow.pop %v1733
        %v1735 = vmul.f32 %v1686, 1.442695
        %v1736 = vpow.pop %v1735
        %v1737 = vmul.f32 %v1687, 1.442695
        %v1738 = vpow.pop %v1737
        %v1739 = vmul.f32 %v1688, 1.442695
        %v1740 = vpow.pop %v1739
        %v1741 = vmul.f32 %v1689, 1.442695
        %v1742 = vpow.pop %v1741
        %v1743 = vmul.f32 %v1690, 1.442695
        %v1744 = vpow.pop %v1743
        %v1745 = vmul.f32 %v1691, 1.442695
        %v1746 = vpow.pop %v1745
        %v1747 = vmul.f32 %v1692, 1.442695
        %v1748 = vpow.pop %v1747
        %v1749 = vmul.f32 %v1693, 1.442695
        %v1750 = vpow.pop %v1749
        %v1751 = vmul.f32 %v1694, 1.442695
        %v1752 = vpow.pop %v1751
        %v1753 = vmul.f32 %v1695, 1.442695
        %v1754 = vpow.pop %v1753
        %v1755 = vmul.f32 %v1696, 1.442695
        %v1756 = vpow.pop %v1755
        %v1757 = vmul.f32 %v1697, 1.442695
        %v1758 = vpow.pop %v1757
        %v1759 = vmul.f32 %v1698, 1.442695
        %v1760 = vpow.pop %v1759
        %v1761 = vmul.f32 %v1699, 1.442695
        %v1762 = vpow.pop %v1761
        %v1763 = vmul.f32 %v1700, 1.442695
        %v1764 = vpow.pop %v1763
        %v1765 = vadd.f32 %v1702, 1.0
        %v1766 = vadd.f32 %v1704, 1.0
        %v1767 = vadd.f32 %v1706, 1.0
        %v1768 = vadd.f32 %v1708, 1.0
        %v1769 = vadd.f32 %v1710, 1.0
        %v1770 = vadd.f32 %v1712, 1.0
        %v1771 = vadd.f32 %v1714, 1.0
        %v1772 = vadd.f32 %v1716, 1.0
        %v1773 = vadd.f32 %v1718, 1.0
        %v1774 = vadd.f32 %v1720, 1.0
        %v1775 = vadd.f32 %v1722, 1.0
        %v1776 = vadd.f32 %v1724, 1.0
        %v1777 = vadd.f32 %v1726, 1.0
        %v1778 = vadd.f32 %v1728, 1.0
        %v1779 = vadd.f32 %v1730, 1.0
        %v1780 = vadd.f32 %v1732, 1.0
        %v1781 = vadd.f32 %v1734, 1.0
        %v1782 = vadd.f32 %v1736, 1.0
        %v1783 = vadd.f32 %v1738, 1.0
        %v1784 = vadd.f32 %v1740, 1.0
        %v1785 = vadd.f32 %v1742, 1.0
        %v1786 = vadd.f32 %v1744, 1.0
        %v1787 = vadd.f32 %v1746, 1.0
        %v1788 = vadd.f32 %v1748, 1.0
        %v1789 = vadd.f32 %v1750, 1.0
        %v1790 = vadd.f32 %v1752, 1.0
        %v1791 = vadd.f32 %v1754, 1.0
        %v1792 = vadd.f32 %v1756, 1.0
        %v1793 = vadd.f32 %v1758, 1.0
        %v1794 = vadd.f32 %v1760, 1.0
        %v1795 = vadd.f32 %v1762, 1.0
        %v1796 = vadd.f32 %v1764, 1.0
        %v1797 = vrcp.pop %v1765
        %v1798 = vmul.f32 1.0, %v1797
        %v1799 = vrcp.pop %v1766
        %v1800 = vmul.f32 1.0, %v1799
        %v1801 = vrcp.pop %v1767
        %v1802 = vmul.f32 1.0, %v1801
        %v1803 = vrcp.pop %v1768
        %v1804 = vmul.f32 1.0, %v1803
        %v1805 = vrcp.pop %v1769
        %v1806 = vmul.f32 1.0, %v1805
        %v1807 = vrcp.pop %v1770
        %v1808 = vmul.f32 1.0, %v1807
        %v1809 = vrcp.pop %v1771
        %v1810 = vmul.f32 1.0, %v1809
        %v1811 = vrcp.pop %v1772
        %v1812 = vmul.f32 1.0, %v1811
        %v1813 = vrcp.pop %v1773
        %v1814 = vmul.f32 1.0, %v1813
        %v1815 = vrcp.pop %v1774
        %v1816 = vmul.f32 1.0, %v1815
        %v1817 = vrcp.pop %v1775
        %v1818 = vmul.f32 1.0, %v1817
        %v1819 = vrcp.pop %v1776
        %v1820 = vmul.f32 1.0, %v1819
        %v1821 = vrcp.pop %v1777
        %v1822 = vmul.f32 1.0, %v1821
        %v1823 = vrcp.pop %v1778
        %v1824 = vmul.f32 1.0, %v1823
        %v1825 = vrcp.pop %v1779
        %v1826 = vmul.f32 1.0, %v1825
        %v1827 = vrcp.pop %v1780
        %v1828 = vmul.f32 1.0, %v1827
        %v1829 = vrcp.pop %v1781
        %v1830 = vmul.f32 1.0, %v1829
        %v1831 = vrcp.pop %v1782
        %v1832 = vmul.f32 1.0, %v1831
        %v1833 = vrcp.pop %v1783
        %v1834 = vmul.f32 1.0, %v1833
        %v1835 = vrcp.pop %v1784
        %v1836 = vmul.f32 1.0, %v1835
        %v1837 = vrcp.pop %v1785
        %v1838 = vmul.f32 1.0, %v1837
        %v1839 = vrcp.pop %v1786
        %v1840 = vmul.f32 1.0, %v1839
        %v1841 = vrcp.pop %v1787
        %v1842 = vmul.f32 1.0, %v1841
        %v1843 = vrcp.pop %v1788
        %v1844 = vmul.f32 1.0, %v1843
        %v1845 = vrcp.pop %v1789
        %v1846 = vmul.f32 1.0, %v1845
        %v1847 = vrcp.pop %v1790
        %v1848 = vmul.f32 1.0, %v1847
        %v1849 = vrcp.pop %v1791
        %v1850 = vmul.f32 1.0, %v1849
        %v1851 = vrcp.pop %v1792
        %v1852 = vmul.f32 1.0, %v1851
        %v1853 = vrcp.pop %v1793
        %v1854 = vmul.f32 1.0, %v1853
        %v1855 = vrcp.pop %v1794
        %v1856 = vmul.f32 1.0, %v1855
        %v1857 = vrcp.pop %v1795
        %v1858 = vmul.f32 1.0, %v1857
        %v1859 = vrcp.pop %v1796
        %v1860 = vmul.f32 1.0, %v1859
        %1893 = vrot.lane.b32.xlu0 %v820, 67
        %v1894 = vpop.permute.xlu0 %1893
        %1895 = vrot.lane.b32.xlu0 %v822, 67
        %v1896 = vpop.permute.xlu0 %1895
        %1897 = vrot.lane.b32.xlu0 %v824, 67
        %v1898 = vpop.permute.xlu0 %1897
        %1899 = vrot.lane.b32.xlu0 %v826, 67
        %v1900 = vpop.permute.xlu0 %1899
        %1901 = vrot.lane.b32.xlu0 %v828, 67
        %v1902 = vpop.permute.xlu0 %1901
        %1903 = vrot.lane.b32.xlu0 %v830, 67
        %v1904 = vpop.permute.xlu0 %1903
        %1905 = vrot.lane.b32.xlu0 %v832, 67
        %v1906 = vpop.permute.xlu0 %1905
        %1907 = vrot.lane.b32.xlu0 %v834, 67
        %v1908 = vpop.permute.xlu0 %1907
        %1909 = vrot.lane.b32.xlu0 %v836, 67
        %v1910 = vpop.permute.xlu0 %1909
        %1911 = vrot.lane.b32.xlu0 %v838, 67
        %v1912 = vpop.permute.xlu0 %1911
        %1913 = vrot.lane.b32.xlu0 %v840, 67
        %v1914 = vpop.permute.xlu0 %1913
        %1915 = vrot.lane.b32.xlu0 %v842, 67
        %v1916 = vpop.permute.xlu0 %1915
        %1917 = vrot.lane.b32.xlu0 %v844, 67
        %v1918 = vpop.permute.xlu0 %1917
        %1919 = vrot.lane.b32.xlu0 %v846, 67
        %v1920 = vpop.permute.xlu0 %1919
        %1921 = vrot.lane.b32.xlu0 %v848, 67
        %v1922 = vpop.permute.xlu0 %1921
        %1923 = vrot.lane.b32.xlu0 %v850, 67
        %v1924 = vpop.permute.xlu0 %1923
        %1925 = vrot.lane.b32.xlu0 %v852, 67
        %v1926 = vpop.permute.xlu0 %1925
        %1927 = vrot.lane.b32.xlu0 %v854, 67
        %v1928 = vpop.permute.xlu0 %1927
        %1929 = vrot.lane.b32.xlu0 %v856, 67
        %v1930 = vpop.permute.xlu0 %1929
        %1931 = vrot.lane.b32.xlu0 %v858, 67
        %v1932 = vpop.permute.xlu0 %1931
        %1933 = vrot.lane.b32.xlu0 %v860, 67
        %v1934 = vpop.permute.xlu0 %1933
        %1935 = vrot.lane.b32.xlu0 %v862, 67
        %v1936 = vpop.permute.xlu0 %1935
        %1937 = vrot.lane.b32.xlu0 %v864, 67
        %v1938 = vpop.permute.xlu0 %1937
        %1939 = vrot.lane.b32.xlu0 %v866, 67
        %v1940 = vpop.permute.xlu0 %1939
        %1941 = vrot.lane.b32.xlu0 %v868, 67
        %v1942 = vpop.permute.xlu0 %1941
        %1943 = vrot.lane.b32.xlu0 %v870, 67
        %v1944 = vpop.permute.xlu0 %1943
        %1945 = vrot.lane.b32.xlu0 %v872, 67
        %v1946 = vpop.permute.xlu0 %1945
        %1947 = vrot.lane.b32.xlu0 %v874, 67
        %v1948 = vpop.permute.xlu0 %1947
        %1949 = vrot.lane.b32.xlu0 %v876, 67
        %v1950 = vpop.permute.xlu0 %1949
        %1951 = vrot.lane.b32.xlu0 %v878, 67
        %v1952 = vpop.permute.xlu0 %1951
        %1953 = vrot.lane.b32.xlu0 %v880, 67
        %v1954 = vpop.permute.xlu0 %1953
        %1955 = vrot.lane.b32.xlu0 %v882, 67
        %v1956 = vpop.permute.xlu0 %1955
        %vm1989 = vcmask 23552
        %v1990 = vsel %vm1989, %v1798, %v1894
        %v1991 = vsel %vm1989, %v1800, %v1896
        %v1992 = vsel %vm1989, %v1802, %v1898
        %v1993 = vsel %vm1989, %v1804, %v1900
        %v1994 = vsel %vm1989, %v1806, %v1902
        %v1995 = vsel %vm1989, %v1808, %v1904
        %v1996 = vsel %vm1989, %v1810, %v1906
        %v1997 = vsel %vm1989, %v1812, %v1908
        %v1998 = vsel %vm1989, %v1814, %v1910
        %v1999 = vsel %vm1989, %v1816, %v1912
        %v2000 = vsel %vm1989, %v1818, %v1914
        %v2001 = vsel %vm1989, %v1820, %v1916
        %v2002 = vsel %vm1989, %v1822, %v1918
        %v2003 = vsel %vm1989, %v1824, %v1920
        %v2004 = vsel %vm1989, %v1826, %v1922
        %v2005 = vsel %vm1989, %v1828, %v1924
        %v2006 = vsel %vm1989, %v1830, %v1926
        %v2007 = vsel %vm1989, %v1832, %v1928
        %v2008 = vsel %vm1989, %v1834, %v1930
        %v2009 = vsel %vm1989, %v1836, %v1932
        %v2010 = vsel %vm1989, %v1838, %v1934
        %v2011 = vsel %vm1989, %v1840, %v1936
        %v2012 = vsel %vm1989, %v1842, %v1938
        %v2013 = vsel %vm1989, %v1844, %v1940
        %v2014 = vsel %vm1989, %v1846, %v1942
        %v2015 = vsel %vm1989, %v1848, %v1944
        %v2016 = vsel %vm1989, %v1850, %v1946
        %v2017 = vsel %vm1989, %v1852, %v1948
        %v2018 = vsel %vm1989, %v1854, %v1950
        %v2019 = vsel %vm1989, %v1856, %v1952
        %v2020 = vsel %vm1989, %v1858, %v1954
        %v2021 = vsel %vm1989, %v1860, %v1956
        %vm2022 = vcmask 31744
        %2023 = vst.msk [vmem:[%s226] sm:$0xff] %vm2022, %v1990
        %2024 = vst.msk [vmem:[%s226 + $0x8] sm:$0xff] %vm2022, %v1991
        %2025 = vst.msk [vmem:[%s226 + $0x10] sm:$0xff] %vm2022, %v1992
        %2026 = vst.msk [vmem:[%s226 + $0x18] sm:$0xff] %vm2022, %v1993
        %2027 = vst.msk [vmem:[%s226 + $0x20] sm:$0xff] %vm2022, %v1994
        %2028 = vst.msk [vmem:[%s226 + $0x28] sm:$0xff] %vm2022, %v1995
        %2029 = vst.msk [vmem:[%s226 + $0x30] sm:$0xff] %vm2022, %v1996
        %2030 = vst.msk [vmem:[%s226 + $0x38] sm:$0xff] %vm2022, %v1997
        %2031 = vst.msk [vmem:[%s226 + $0x40] sm:$0xff] %vm2022, %v1998
        %2032 = vst.msk [vmem:[%s226 + $0x48] sm:$0xff] %vm2022, %v1999
        %2033 = vst.msk [vmem:[%s226 + $0x50] sm:$0xff] %vm2022, %v2000
        %2034 = vst.msk [vmem:[%s226 + $0x58] sm:$0xff] %vm2022, %v2001
        %2035 = vst.msk [vmem:[%s226 + $0x60] sm:$0xff] %vm2022, %v2002
        %2036 = vst.msk [vmem:[%s226 + $0x68] sm:$0xff] %vm2022, %v2003
        %2037 = vst.msk [vmem:[%s226 + $0x70] sm:$0xff] %vm2022, %v2004
        %2038 = vst.msk [vmem:[%s226 + $0x78] sm:$0xff] %vm2022, %v2005
        %2039 = vst.msk [vmem:[%s226 + $0x80] sm:$0xff] %vm2022, %v2006
        %2040 = vst.msk [vmem:[%s226 + $0x88] sm:$0xff] %vm2022, %v2007
        %2041 = vst.msk [vmem:[%s226 + $0x90] sm:$0xff] %vm2022, %v2008
        %2042 = vst.msk [vmem:[%s226 + $0x98] sm:$0xff] %vm2022, %v2009
        %2043 = vst.msk [vmem:[%s226 + $0xa0] sm:$0xff] %vm2022, %v2010
        %2044 = vst.msk [vmem:[%s226 + $0xa8] sm:$0xff] %vm2022, %v2011
        %2045 = vst.msk [vmem:[%s226 + $0xb0] sm:$0xff] %vm2022, %v2012
        %2046 = vst.msk [vmem:[%s226 + $0xb8] sm:$0xff] %vm2022, %v2013
        %2047 = vst.msk [vmem:[%s226 + $0xc0] sm:$0xff] %vm2022, %v2014
        %2048 = vst.msk [vmem:[%s226 + $0xc8] sm:$0xff] %vm2022, %v2015
        %2049 = vst.msk [vmem:[%s226 + $0xd0] sm:$0xff] %vm2022, %v2016
        %2050 = vst.msk [vmem:[%s226 + $0xd8] sm:$0xff] %vm2022, %v2017
        %2051 = vst.msk [vmem:[%s226 + $0xe0] sm:$0xff] %vm2022, %v2018
        %2052 = vst.msk [vmem:[%s226 + $0xe8] sm:$0xff] %vm2022, %v2019
        %2053 = vst.msk [vmem:[%s226 + $0xf0] sm:$0xff] %vm2022, %v2020
        %2054 = vst.msk [vmem:[%s226 + $0xf8] sm:$0xff] %vm2022, %v2021
        %s2055 = sand.u32 %s134, 1
        %s2056 = sand.u32 %s134, 1
        %s2057 = smul.addr %s2056, 256
        %s2058 = scalar_lea.vmem [#allocation2], %s2057
        // Predicated region
        $region41: #{tpu_custom_call.1} parent=39 // pred_check
          %p2059 = pneg %p144
        $region42: #{tpu_custom_call.1} parent=39 // pred_check_branch
          %2061 = sbr.rel (%p2059) target = $region44
        $region43: #{tpu_custom_call.1} parent=39 // pred_region
          %s2062 = smul.u32 32, %s16
          %s2063 = ssub.s32 38, %s2062
          %p2064 = scmp.lt.s32.totalorder %s2063, 32
          %s2065 = scalar_select %p2064, %s2063, 32
          %s2066 = smul.u32 128, %s2065
          %p2067 = scmp.ne.s32.totalorder 0, %s2066
          %s2068 = smul.addr %s2062, 8
          %s2069 = scalar_lea.vmem %s5, %s2068
          // Predicated region
          $region45: #{tpu_custom_call.1} parent=43 // pred_check
            %p2070 = pneg %p2067
          $region46: #{tpu_custom_call.1} parent=43 // pred_check_branch
            %2072 = sbr.rel (%p2070) target = $region48
          $region47: #{tpu_custom_call.1} parent=43 // pred_region
            // Predicated region
            $region49: #{tpu_custom_call.1} parent=47 // pred_check
              _
            $region50: #{tpu_custom_call.1} parent=47 // pred_check_branch
              %2074 = sbr.rel (0) target = $region52
            $region51: #{tpu_custom_call.1} parent=47 // pred_region
              // Predicated region
              $region71: #{tpu_custom_call.1} parent=51 // pred_check
                _
              $region72: #{tpu_custom_call.1} parent=51 // pred_check_branch
                %2185 = sbr.rel (0) target = $region74
              $region73: #{tpu_custom_call.1} parent=51 // pred_region
                %s2186 = sshrl.u32 %s2065, 5
                // While loop
                $region75: #{tpu_custom_call.1} parent=73 // loop_pre_header
                  _
                $region76: #{tpu_custom_call.1} parent=73 // loop_header
                  %s2188 = sphi 0, %s2190
                  %p2189 = scmp.ge.s32.totalorder %s2188, %s2186
                  %s2193 = sphi 0, %s2262
                  %s2194 = sphi %s2058, %s2265
                  %s2195 = sphi %s2069, %s2266
                $region77: #{tpu_custom_call.1} parent=73 // loop_header_branch
                  %2192 = sbr.rel (%p2189) target = $region81
                $region78: #{tpu_custom_call.1} parent=73 // loop_body
                  %v2196 = vld [vmem:[%s2194] sm:$0xff]
                  %2197 = vst [vmem:[%s2195] sm:$0xff] %v2196
                  %v2198 = vld [vmem:[%s2194 + $0x8] sm:$0xff]
                  %2199 = vst [vmem:[%s2195 + $0x8] sm:$0xff] %v2198
                  %v2200 = vld [vmem:[%s2194 + $0x10] sm:$0xff]
                  %2201 = vst [vmem:[%s2195 + $0x10] sm:$0xff] %v2200
                  %v2202 = vld [vmem:[%s2194 + $0x18] sm:$0xff]
                  %2203 = vst [vmem:[%s2195 + $0x18] sm:$0xff] %v2202
                  %v2204 = vld [vmem:[%s2194 + $0x20] sm:$0xff]
                  %2205 = vst [vmem:[%s2195 + $0x20] sm:$0xff] %v2204
                  %v2206 = vld [vmem:[%s2194 + $0x28] sm:$0xff]
                  %2207 = vst [vmem:[%s2195 + $0x28] sm:$0xff] %v2206
                  %v2208 = vld [vmem:[%s2194 + $0x30] sm:$0xff]
                  %2209 = vst [vmem:[%s2195 + $0x30] sm:$0xff] %v2208
                  %v2210 = vld [vmem:[%s2194 + $0x38] sm:$0xff]
                  %2211 = vst [vmem:[%s2195 + $0x38] sm:$0xff] %v2210
                  %v2212 = vld [vmem:[%s2194 + $0x40] sm:$0xff]
                  %2213 = vst [vmem:[%s2195 + $0x40] sm:$0xff] %v2212
                  %v2214 = vld [vmem:[%s2194 + $0x48] sm:$0xff]
                  %2215 = vst [vmem:[%s2195 + $0x48] sm:$0xff] %v2214
                  %v2216 = vld [vmem:[%s2194 + $0x50] sm:$0xff]
                  %2217 = vst [vmem:[%s2195 + $0x50] sm:$0xff] %v2216
                  %v2218 = vld [vmem:[%s2194 + $0x58] sm:$0xff]
                  %2219 = vst [vmem:[%s2195 + $0x58] sm:$0xff] %v2218
                  %v2220 = vld [vmem:[%s2194 + $0x60] sm:$0xff]
                  %2221 = vst [vmem:[%s2195 + $0x60] sm:$0xff] %v2220
                  %v2222 = vld [vmem:[%s2194 + $0x68] sm:$0xff]
                  %2223 = vst [vmem:[%s2195 + $0x68] sm:$0xff] %v2222
                  %v2224 = vld [vmem:[%s2194 + $0x70] sm:$0xff]
                  %2225 = vst [vmem:[%s2195 + $0x70] sm:$0xff] %v2224
                  %v2226 = vld [vmem:[%s2194 + $0x78] sm:$0xff]
                  %2227 = vst [vmem:[%s2195 + $0x78] sm:$0xff] %v2226
                  %v2228 = vld [vmem:[%s2194 + $0x80] sm:$0xff]
                  %2229 = vst [vmem:[%s2195 + $0x80] sm:$0xff] %v2228
                  %v2230 = vld [vmem:[%s2194 + $0x88] sm:$0xff]
                  %2231 = vst [vmem:[%s2195 + $0x88] sm:$0xff] %v2230
                  %v2232 = vld [vmem:[%s2194 + $0x90] sm:$0xff]
                  %2233 = vst [vmem:[%s2195 + $0x90] sm:$0xff] %v2232
                  %v2234 = vld [vmem:[%s2194 + $0x98] sm:$0xff]
                  %2235 = vst [vmem:[%s2195 + $0x98] sm:$0xff] %v2234
                  %v2236 = vld [vmem:[%s2194 + $0xa0] sm:$0xff]
                  %2237 = vst [vmem:[%s2195 + $0xa0] sm:$0xff] %v2236
                  %v2238 = vld [vmem:[%s2194 + $0xa8] sm:$0xff]
                  %2239 = vst [vmem:[%s2195 + $0xa8] sm:$0xff] %v2238
                  %v2240 = vld [vmem:[%s2194 + $0xb0] sm:$0xff]
                  %2241 = vst [vmem:[%s2195 + $0xb0] sm:$0xff] %v2240
                  %v2242 = vld [vmem:[%s2194 + $0xb8] sm:$0xff]
                  %2243 = vst [vmem:[%s2195 + $0xb8] sm:$0xff] %v2242
                  %v2244 = vld [vmem:[%s2194 + $0xc0] sm:$0xff]
                  %2245 = vst [vmem:[%s2195 + $0xc0] sm:$0xff] %v2244
                  %v2246 = vld [vmem:[%s2194 + $0xc8] sm:$0xff]
                  %2247 = vst [vmem:[%s2195 + $0xc8] sm:$0xff] %v2246
                  %v2248 = vld [vmem:[%s2194 + $0xd0] sm:$0xff]
                  %2249 = vst [vmem:[%s2195 + $0xd0] sm:$0xff] %v2248
                  %v2250 = vld [vmem:[%s2194 + $0xd8] sm:$0xff]
                  %2251 = vst [vmem:[%s2195 + $0xd8] sm:$0xff] %v2250
                  %v2252 = vld [vmem:[%s2194 + $0xe0] sm:$0xff]
                  %2253 = vst [vmem:[%s2195 + $0xe0] sm:$0xff] %v2252
                  %v2254 = vld [vmem:[%s2194 + $0xe8] sm:$0xff]
                  %2255 = vst [vmem:[%s2195 + $0xe8] sm:$0xff] %v2254
                  %v2256 = vld [vmem:[%s2194 + $0xf0] sm:$0xff]
                  %2257 = vst [vmem:[%s2195 + $0xf0] sm:$0xff] %v2256
                  %v2258 = vld [vmem:[%s2194 + $0xf8] sm:$0xff]
                  %2259 = vst [vmem:[%s2195 + $0xf8] sm:$0xff] %v2258
                  %s2260 = sadd.s32 1, %s2193
                  %p2261 = scmp.ge.s32.totalorder %s2260, %s2186
                  %s2262 = scalar_select %p2261, 0, %s2260
                  %s2263 = smul.u32 %s2262, 256
                  %s2264 = smul.u32 %s2262, 256
                  %s2265 = scalar_lea.vmem %s2058, %s2263 [#allocation2]
                  %s2266 = scalar_lea.vmem %s2069, %s2264
                $region79: #{tpu_custom_call.1} parent=73 // loop_footer
                  %s2190 = sadd.s32 %s2188, 1
                $region80: #{tpu_custom_call.1} parent=73 // loop_footer_branch
                  %2187 = sbr.rel target = $region76
                $region81: #{tpu_custom_call.1} parent=73 // loop_exit
                  _
                %s2267 = sshrl.u32 %s2065, 5
                %s2268 = sand.u32 %s2065, 31
                %s2269 = smul.u32 %s2267, 32
                %s2270 = smul.u32 8, %s2269
                %s2271 = scalar_lea.vmem %s2058, %s2270 [#allocation2]
                %s2272 = smul.u32 8, %s2269
                %s2273 = scalar_lea.vmem %s2069, %s2272
                // While loop
                $region82: #{tpu_custom_call.1} parent=73 // loop_pre_header
                  _
                $region83: #{tpu_custom_call.1} parent=73 // loop_header
                  %s2275 = sphi 0, %s2277
                  %p2276 = scmp.ge.s32.totalorder %s2275, %s2268
                  %s2280 = sphi 0, %s2287
                  %s2281 = sphi %s2271, %s2290
                  %s2282 = sphi %s2273, %s2291
                $region84: #{tpu_custom_call.1} parent=73 // loop_header_branch
                  %2279 = sbr.rel (%p2276) target = $region88
                $region85: #{tpu_custom_call.1} parent=73 // loop_body
                  %v2283 = vld [vmem:[%s2281] sm:$0xff]
                  %2284 = vst [vmem:[%s2282] sm:$0xff] %v2283
                  %s2285 = sadd.s32 1, %s2280
                  %p2286 = scmp.ge.s32.totalorder %s2285, %s2268
                  %s2287 = scalar_select %p2286, 0, %s2285
                  %s2288 = smul.u32 %s2287, 8
                  %s2289 = smul.u32 %s2287, 8
                  %s2290 = scalar_lea.vmem %s2271, %s2288 [#allocation2]
                  %s2291 = scalar_lea.vmem %s2273, %s2289
                $region86: #{tpu_custom_call.1} parent=73 // loop_footer
                  %s2277 = sadd.s32 %s2275, 1
                $region87: #{tpu_custom_call.1} parent=73 // loop_footer_branch
                  %2274 = sbr.rel target = $region83
                $region88: #{tpu_custom_call.1} parent=73 // loop_exit
                  _
              $region74: #{tpu_custom_call.1} parent=51 // pred_fallthru
                _
              // Predicated region
              $region89: #{tpu_custom_call.1} parent=51 // pred_check
                _
              $region90: #{tpu_custom_call.1} parent=51 // pred_check_branch
                %2293 = sbr.rel target = $region92
              $region91: #{tpu_custom_call.1} parent=51 // pred_region
                _
              $region92: #{tpu_custom_call.1} parent=51 // pred_fallthru
                _
            $region52: #{tpu_custom_call.1} parent=47 // pred_fallthru
              _
            // Predicated region
            $region53: #{tpu_custom_call.1} parent=47 // pred_check
              _
            $region54: #{tpu_custom_call.1} parent=47 // pred_check_branch
              %2076 = sbr.rel target = $region56
            $region55: #{tpu_custom_call.1} parent=47 // pred_region
              %s2078 = sshrl.u32 %s2065, 5
              // While loop
              $region57: #{tpu_custom_call.1} parent=55 // loop_pre_header
                _
              $region58: #{tpu_custom_call.1} parent=55 // loop_header
                %s2080 = sphi 0, %s2082
                %p2081 = scmp.ge.s32.totalorder %s2080, %s2078
                %s2085 = sphi 0, %s2154
                %s2086 = sphi %s2058, %s2157
                %s2087 = sphi %s2069, %s2158
              $region59: #{tpu_custom_call.1} parent=55 // loop_header_branch
                %2084 = sbr.rel (%p2081) target = $region63
              $region60: #{tpu_custom_call.1} parent=55 // loop_body
                %v2088 = vld [vmem:[%s2086] sm:$0xff]
                %2089 = vst [vmem:[%s2087] sm:$0xff] %v2088
                %v2090 = vld [vmem:[%s2086 + $0x8] sm:$0xff]
                %2091 = vst [vmem:[%s2087 + $0x8] sm:$0xff] %v2090
                %v2092 = vld [vmem:[%s2086 + $0x10] sm:$0xff]
                %2093 = vst [vmem:[%s2087 + $0x10] sm:$0xff] %v2092
                %v2094 = vld [vmem:[%s2086 + $0x18] sm:$0xff]
                %2095 = vst [vmem:[%s2087 + $0x18] sm:$0xff] %v2094
                %v2096 = vld [vmem:[%s2086 + $0x20] sm:$0xff]
                %2097 = vst [vmem:[%s2087 + $0x20] sm:$0xff] %v2096
                %v2098 = vld [vmem:[%s2086 + $0x28] sm:$0xff]
                %2099 = vst [vmem:[%s2087 + $0x28] sm:$0xff] %v2098
                %v2100 = vld [vmem:[%s2086 + $0x30] sm:$0xff]
                %2101 = vst [vmem:[%s2087 + $0x30] sm:$0xff] %v2100
                %v2102 = vld [vmem:[%s2086 + $0x38] sm:$0xff]
                %2103 = vst [vmem:[%s2087 + $0x38] sm:$0xff] %v2102
                %v2104 = vld [vmem:[%s2086 + $0x40] sm:$0xff]
                %2105 = vst [vmem:[%s2087 + $0x40] sm:$0xff] %v2104
                %v2106 = vld [vmem:[%s2086 + $0x48] sm:$0xff]
                %2107 = vst [vmem:[%s2087 + $0x48] sm:$0xff] %v2106
                %v2108 = vld [vmem:[%s2086 + $0x50] sm:$0xff]
                %2109 = vst [vmem:[%s2087 + $0x50] sm:$0xff] %v2108
                %v2110 = vld [vmem:[%s2086 + $0x58] sm:$0xff]
                %2111 = vst [vmem:[%s2087 + $0x58] sm:$0xff] %v2110
                %v2112 = vld [vmem:[%s2086 + $0x60] sm:$0xff]
                %2113 = vst [vmem:[%s2087 + $0x60] sm:$0xff] %v2112
                %v2114 = vld [vmem:[%s2086 + $0x68] sm:$0xff]
                %2115 = vst [vmem:[%s2087 + $0x68] sm:$0xff] %v2114
                %v2116 = vld [vmem:[%s2086 + $0x70] sm:$0xff]
                %2117 = vst [vmem:[%s2087 + $0x70] sm:$0xff] %v2116
                %v2118 = vld [vmem:[%s2086 + $0x78] sm:$0xff]
                %2119 = vst [vmem:[%s2087 + $0x78] sm:$0xff] %v2118
                %v2120 = vld [vmem:[%s2086 + $0x80] sm:$0xff]
                %2121 = vst [vmem:[%s2087 + $0x80] sm:$0xff] %v2120
                %v2122 = vld [vmem:[%s2086 + $0x88] sm:$0xff]
                %2123 = vst [vmem:[%s2087 + $0x88] sm:$0xff] %v2122
                %v2124 = vld [vmem:[%s2086 + $0x90] sm:$0xff]
                %2125 = vst [vmem:[%s2087 + $0x90] sm:$0xff] %v2124
                %v2126 = vld [vmem:[%s2086 + $0x98] sm:$0xff]
                %2127 = vst [vmem:[%s2087 + $0x98] sm:$0xff] %v2126
                %v2128 = vld [vmem:[%s2086 + $0xa0] sm:$0xff]
                %2129 = vst [vmem:[%s2087 + $0xa0] sm:$0xff] %v2128
                %v2130 = vld [vmem:[%s2086 + $0xa8] sm:$0xff]
                %2131 = vst [vmem:[%s2087 + $0xa8] sm:$0xff] %v2130
                %v2132 = vld [vmem:[%s2086 + $0xb0] sm:$0xff]
                %2133 = vst [vmem:[%s2087 + $0xb0] sm:$0xff] %v2132
                %v2134 = vld [vmem:[%s2086 + $0xb8] sm:$0xff]
                %2135 = vst [vmem:[%s2087 + $0xb8] sm:$0xff] %v2134
                %v2136 = vld [vmem:[%s2086 + $0xc0] sm:$0xff]
                %2137 = vst [vmem:[%s2087 + $0xc0] sm:$0xff] %v2136
                %v2138 = vld [vmem:[%s2086 + $0xc8] sm:$0xff]
                %2139 = vst [vmem:[%s2087 + $0xc8] sm:$0xff] %v2138
                %v2140 = vld [vmem:[%s2086 + $0xd0] sm:$0xff]
                %2141 = vst [vmem:[%s2087 + $0xd0] sm:$0xff] %v2140
                %v2142 = vld [vmem:[%s2086 + $0xd8] sm:$0xff]
                %2143 = vst [vmem:[%s2087 + $0xd8] sm:$0xff] %v2142
                %v2144 = vld [vmem:[%s2086 + $0xe0] sm:$0xff]
                %2145 = vst [vmem:[%s2087 + $0xe0] sm:$0xff] %v2144
                %v2146 = vld [vmem:[%s2086 + $0xe8] sm:$0xff]
                %2147 = vst [vmem:[%s2087 + $0xe8] sm:$0xff] %v2146
                %v2148 = vld [vmem:[%s2086 + $0xf0] sm:$0xff]
                %2149 = vst [vmem:[%s2087 + $0xf0] sm:$0xff] %v2148
                %v2150 = vld [vmem:[%s2086 + $0xf8] sm:$0xff]
                %2151 = vst [vmem:[%s2087 + $0xf8] sm:$0xff] %v2150
                %s2152 = sadd.s32 1, %s2085
                %p2153 = scmp.ge.s32.totalorder %s2152, %s2078
                %s2154 = scalar_select %p2153, 0, %s2152
                %s2155 = smul.u32 %s2154, 256
                %s2156 = smul.u32 %s2154, 256
                %s2157 = scalar_lea.vmem %s2058, %s2155 [#allocation2]
                %s2158 = scalar_lea.vmem %s2069, %s2156
              $region61: #{tpu_custom_call.1} parent=55 // loop_footer
                %s2082 = sadd.s32 %s2080, 1
              $region62: #{tpu_custom_call.1} parent=55 // loop_footer_branch
                %2079 = sbr.rel target = $region58
              $region63: #{tpu_custom_call.1} parent=55 // loop_exit
                _
              %s2159 = sshrl.u32 %s2065, 5
              %s2160 = sand.u32 %s2065, 31
              %s2161 = smul.u32 %s2159, 32
              %s2162 = smul.u32 8, %s2161
              %s2163 = scalar_lea.vmem %s2058, %s2162 [#allocation2]
              %s2164 = smul.u32 8, %s2161
              %s2165 = scalar_lea.vmem %s2069, %s2164
              // While loop
              $region64: #{tpu_custom_call.1} parent=55 // loop_pre_header
                _
              $region65: #{tpu_custom_call.1} parent=55 // loop_header
                %s2167 = sphi 0, %s2169
                %p2168 = scmp.ge.s32.totalorder %s2167, %s2160
                %s2172 = sphi 0, %s2179
                %s2173 = sphi %s2163, %s2182
                %s2174 = sphi %s2165, %s2183
              $region66: #{tpu_custom_call.1} parent=55 // loop_header_branch
                %2171 = sbr.rel (%p2168) target = $region70
              $region67: #{tpu_custom_call.1} parent=55 // loop_body
                %v2175 = vld [vmem:[%s2173] sm:$0xff]
                %2176 = vst [vmem:[%s2174] sm:$0xff] %v2175
                %s2177 = sadd.s32 1, %s2172
                %p2178 = scmp.ge.s32.totalorder %s2177, %s2160
                %s2179 = scalar_select %p2178, 0, %s2177
                %s2180 = smul.u32 %s2179, 8
                %s2181 = smul.u32 %s2179, 8
                %s2182 = scalar_lea.vmem %s2163, %s2180 [#allocation2]
                %s2183 = scalar_lea.vmem %s2165, %s2181
              $region68: #{tpu_custom_call.1} parent=55 // loop_footer
                %s2169 = sadd.s32 %s2167, 1
              $region69: #{tpu_custom_call.1} parent=55 // loop_footer_branch
                %2166 = sbr.rel target = $region65
              $region70: #{tpu_custom_call.1} parent=55 // loop_exit
                _
            $region56: #{tpu_custom_call.1} parent=47 // pred_fallthru
              _
          $region48: #{tpu_custom_call.1} parent=43 // pred_fallthru
            _
          %2294 = vnop
        $region44: #{tpu_custom_call.1} parent=39 // pred_fallthru
          _
      $region40: #{tpu_custom_call.1} parent=5 // pred_fallthru
        _
      %p2295 = scmp.le.s32.totalorder 2, %s11
      // Predicated region
      $region93: #{tpu_custom_call.1} parent=5 // pred_check
        %p2296 = pneg %p2295
      $region94: #{tpu_custom_call.1} parent=5 // pred_check_branch
        %2298 = sbr.rel (%p2296) target = $region96
      $region95: #{tpu_custom_call.1} parent=5 // pred_region
        %s2299 = ssub.s32 %s11, 2
        // Predicated region
        $region97: #{tpu_custom_call.1} parent=95 // pred_check
          %p2300 = pneg %p150
        $region98: #{tpu_custom_call.1} parent=95 // pred_check_branch
          %2302 = sbr.rel (%p2300) target = $region100
        $region99: #{tpu_custom_call.1} parent=95 // pred_region
          %s2303 = sand.u32 %s135, 1
          %s2304 = sand.u32 %s135, 1
          %s2305 = smul.addr %s2304, 256
          %s2306 = scalar_lea.vmem [#allocation2], %s2305
        $region100: #{tpu_custom_call.1} parent=95 // pred_fallthru
          _
      $region96: #{tpu_custom_call.1} parent=5 // pred_fallthru
        _
    $region6: #{tpu_custom_call.1} parent=1 // loop_footer
      %s15 = sadd.s32 1, %s11
    $region7: #{tpu_custom_call.1} parent=1 // loop_footer_branch
      %10 = sbr.rel target = $region3
    $region8: #{tpu_custom_call.1} parent=1 // loop_exit
      _

</llo_original>
